<compile_context>
chip_gen: v5e
topology: v5e:2x2
jax: 0.10.0
libtpu: 0.0.40
codegen_flags: <defaults>
</compile_context>

<pallas_src>
import functools

import jax
import jax.numpy as jnp
import numpy as np
from jax import lax
from jax.experimental import pallas as pl
from jax.experimental.pallas import tpu as pltpu


# ----------------------------------------------------------------------------
# Fused Pallas kernel: one (batch, time-tile) grid step
# ----------------------------------------------------------------------------
def _asp_kernel(x_ref, w1_ref, b1_ref, w2_ref, o_ref,
                m_sc, l_sc, sx_sc, sx2_sc, *, seq_len, masked_tail):
    """x_ref: (1, C, TT) native channels-first tile (time on lanes).
    w1_ref: (D, C) bf16, b1_ref: (D, 1) f32, w2_ref: (C, D) bf16.
    o_ref : (1, 2C, 1).  Scratch: online-softmax accumulators, (C, 1) f32."""
    t = pl.program_id(1)
    C = o_ref.shape[1] // 2

    @pl.when(t == 0)
    def _init():
        m_sc[...] = jnp.full_like(m_sc, -jnp.inf)
        l_sc[...] = jnp.zeros_like(l_sc)
        sx_sc[...] = jnp.zeros_like(sx_sc)
        sx2_sc[...] = jnp.zeros_like(sx2_sc)

    x = x_ref[0].astype(jnp.float32)                    # (C, TT)
    tt = x.shape[-1]

    if masked_tail:
        # Zero padded timesteps so OOB-padded garbage never reaches the
        # matmuls or the moments (static branch: only compiled if T % TT != 0).
        pos = t * tt + lax.broadcasted_iota(jnp.int32, (1, tt), 1)
        valid = pos < seq_len                           # (1, TT)
        x = jnp.where(valid, x, 0.0)

    x_bf = x.astype(jnp.bfloat16)

    # linear1 (1x1 conv) + tanh:  h = tanh(W1 @ x + b1)           (D, TT)
    h = jnp.tanh(
        jnp.dot(w1_ref[...], x_bf, preferred_element_type=jnp.float32)
        + b1_ref[...])
    # linear2 (1x1 conv):         s = W2 @ h                      (C, TT)
    # (b2 omitted: per-channel constant shift is a softmax-over-time no-op)
    s = jnp.dot(w2_ref[...], h.astype(jnp.bfloat16),
                preferred_element_type=jnp.float32)

    if masked_tail:
        s = jnp.where(valid, s, -jnp.inf)               # padded steps -> p = 0

    # Online softmax over time (lane axis), fused with the weighted moments.
    m_prev = m_sc[...]                                  # (C, 1)
    m_new = jnp.maximum(m_prev, s.max(axis=-1, keepdims=True))
    corr = jnp.exp(m_prev - m_new)                      # == 0 on t == 0
    p = jnp.exp(s - m_new)                              # (C, TT)
    px = p * x
    l_sc[...] = corr * l_sc[...] + p.sum(axis=-1, keepdims=True)
    sx_sc[...] = corr * sx_sc[...] + px.sum(axis=-1, keepdims=True)
    sx2_sc[...] = corr * sx2_sc[...] + (px * x).sum(axis=-1, keepdims=True)
    m_sc[...] = m_new

    @pl.when(t == pl.num_programs(1) - 1)
    def _finalize():
        inv_l = 1.0 / l_sc[...]
        mean = sx_sc[...] * inv_l                       # (C, 1)
        var = sx2_sc[...] * inv_l - mean * mean
        std = jnp.sqrt(jnp.maximum(var, 1e-9))
        o_ref[0, :C, :] = mean.astype(o_ref.dtype)
        o_ref[0, C:, :] = std.astype(o_ref.dtype)


# ----------------------------------------------------------------------------
# Host-side wrapper
# ----------------------------------------------------------------------------
def attentive_stats_pool(x_bct, w1, b1, w2, b2=None, *, time_tile=None):
    """x_bct: (B, in_dim, T); w1 = linear1.weight[:, :, 0]  (bneck, in_dim);
    w2 = linear2.weight[:, :, 0]  (in_dim, bneck).  Returns (B, 2*in_dim).
    b2 is accepted for API parity but unused (softmax-over-time no-op)."""
    del b2
    B, C, T = x_bct.shape
    D = w1.shape[0]
    assert w1.shape == (D, C) and w2.shape == (C, D) and b1.shape == (D,)

    itemsize = jnp.dtype(x_bct.dtype).itemsize

    if time_tile is None:
        # Large streaming tiles amortize per-grid-step overhead; cap each
        # x buffer at ~8 MiB so double-buffering also fits v7x's 64 MiB VMEM.
        per_buf_budget = 8 * 1024 * 1024
        max_tt = max(128, (per_buf_budget // (C * itemsize)) // 128 * 128)
        time_tile = min(512, max_tt)
    if time_tile >= T:
        time_tile = T                       # single full-extent block (legal for any T)
    else:
        assert time_tile % 128 == 0, "time_tile must be a multiple of 128 (or >= T)"

    n_t = pl.cdiv(T, time_tile)
    masked_tail = (T % time_tile) != 0

    w1_bf = w1.astype(jnp.bfloat16)
    w2_bf = w2.astype(jnp.bfloat16)
    b1_col = b1.reshape(D, 1).astype(jnp.float32)

    # Explicit scoped-VMEM budget (v5e default is 16 MiB).
    x_block_bytes = C * time_tile * itemsize
    weight_bytes = (w1_bf.size + w2_bf.size) * 2 + b1_col.size * 4
    need = 2 * x_block_bytes + 2 * weight_bytes + 2 * (2 * C * 4) + 4 * C * 4
    vmem_limit = int(min(64 * 1024 * 1024, max(32 * 1024 * 1024, 2 * need)))

    kernel = functools.partial(_asp_kernel, seq_len=T, masked_tail=masked_tail)

    out = pl.pallas_call(
        kernel,
        out_shape=jax.ShapeDtypeStruct((B, 2 * C, 1), jnp.float32),
        grid_spec=pltpu.PrefetchScalarGridSpec(
            num_scalar_prefetch=0,
            grid=(B, n_t),
            in_specs=[
                pl.BlockSpec((1, C, time_tile), lambda b, t: (b, 0, t)),
                pl.BlockSpec((D, C), lambda b, t: (0, 0)),   # grid-invariant
                pl.BlockSpec((D, 1), lambda b, t: (0, 0)),
                pl.BlockSpec((C, D), lambda b, t: (0, 0)),
            ],
            out_specs=pl.BlockSpec((1, 2 * C, 1), lambda b, t: (b, 0, 0)),
            scratch_shapes=[
                pltpu.VMEM((C, 1), jnp.float32),   # running max m
                pltpu.VMEM((C, 1), jnp.float32),   # running denom l
                pltpu.VMEM((C, 1), jnp.float32),   # sum p * x
                pltpu.VMEM((C, 1), jnp.float32),   # sum p * x^2
            ],
        ),
        compiler_params=pltpu.CompilerParams(
            dimension_semantics=("parallel", "arbitrary"),
            vmem_limit_bytes=vmem_limit),
    )(x_bct, w1_bf, b1_col, w2_bf)

    return out.reshape(B, 2 * C)


# ----------------------------------------------------------------------------
# Pure-JAX reference (matches the PyTorch module exactly, incl. b2)
# ----------------------------------------------------------------------------
def ref_forward(x_bct, w1, b1, w2, b2):
    a = jnp.tanh(jnp.einsum('dc,bct->bdt', w1, x_bct) + b1[None, :, None])
    s = jnp.einsum('cd,bdt->bct', w2, a) + b2[None, :, None]
    alpha = jax.nn.softmax(s, axis=2)
    mean = jnp.sum(alpha * x_bct, axis=2)
    resid = jnp.sum(alpha * x_bct ** 2, axis=2) - mean ** 2
    std = jnp.sqrt(jnp.maximum(resid, 1e-9))
    return jnp.concatenate([mean, std], axis=1)


# ----------------------------------------------------------------------------
if __name__ == "__main__":
    # Module-consistent small config: batch=2, in_dim=128, bottleneck_dim=128
    # (module default), T=320 (ragged vs. the 128-wide tile so both the
    # online-softmax accumulation and the tail-masking path are exercised).
    B, C, D, T = 2, 128, 128, 320

    key = jax.random.PRNGKey(0)
    kx, k1, k2, k3, k4 = jax.random.split(key, 5)
    x = jax.random.normal(kx, (B, C, T), jnp.float32)
    w1 = 0.1 * jax.random.normal(k1, (D, C), jnp.float32)   # linear1.weight[:,:,0]
    b1 = 0.1 * jax.random.normal(k2, (D,), jnp.float32)
    w2 = 0.1 * jax.random.normal(k3, (C, D), jnp.float32)   # linear2.weight[:,:,0]
    b2 = 0.1 * jax.random.normal(k4, (C,), jnp.float32)

    ref = jax.block_until_ready(ref_forward(x, w1, b1, w2, b2))

    # Multi-tile + masked-tail path (3 time tiles of 128, last has 64 valid).
    out_tiled = jax.block_until_ready(
        attentive_stats_pool(x, w1, b1, w2, b2, time_tile=128))
    # Default tile selection (single full-sequence tile at this small T).
    out_default = jax.block_until_ready(
        attentive_stats_pool(x, w1, b1, w2, b2))

    assert out_tiled.shape == (B, 2 * C), out_tiled.shape
    assert out_default.shape == (B, 2 * C), out_default.shape
    # bf16 matmul operands (f32 accumulation) => slightly looser tolerance.
    np.testing.assert_allclose(np.asarray(out_tiled), np.asarray(ref),
                               rtol=2e-2, atol=2e-2)
    np.testing.assert_allclose(np.asarray(out_default), np.asarray(ref),
                               rtol=2e-2, atol=2e-2)
    print("KERNEL_OK")
</pallas_src>

<mosaic_0001>
module attributes {stable_mosaic.version = 11 : i64} {
  func.func @_asp_kernel(%arg0: i32, %arg1: i32, %arg2: memref<1x128x128xf32, #tpu.memory_space<vmem>>, %arg3: memref<128x128xbf16, #tpu.memory_space<vmem>>, %arg4: memref<128x1xf32, #tpu.memory_space<vmem>>, %arg5: memref<128x128xbf16, #tpu.memory_space<vmem>>, %arg6: memref<1x256x1xf32, #tpu.memory_space<vmem>>, %arg7: memref<128x1xf32, #tpu.memory_space<vmem>>, %arg8: memref<128x1xf32, #tpu.memory_space<vmem>>, %arg9: memref<128x1xf32, #tpu.memory_space<vmem>>, %arg10: memref<128x1xf32, #tpu.memory_space<vmem>>) attributes {dimension_semantics = [#tpu.dimension_semantics<parallel>, #tpu.dimension_semantics<arbitrary>], iteration_bounds = array<i64: 2, 3>, scalar_prefetch = 0 : i64, scratch_operands = 4 : i64, tpu.core_type = #tpu.core_type<tc>, window_params = [{transform_indices = @transform_0, window_bounds = array<i64: 1, 128, 128>}, {pipeline_mode = #tpu.pipeline_mode<synchronous>, transform_indices = @transform_1, window_bounds = array<i64: 128, 128>}, {pipeline_mode = #tpu.pipeline_mode<synchronous>, transform_indices = @transform_2, window_bounds = array<i64: 128, 1>}, {pipeline_mode = #tpu.pipeline_mode<synchronous>, transform_indices = @transform_3, window_bounds = array<i64: 128, 128>}, {transform_indices = @transform_4, window_bounds = array<i64: 1, 256, 1>}]} {
    %c0_i32 = arith.constant 0 : i32
    %0 = arith.cmpi eq, %arg1, %c0_i32 : i32
    %1 = arith.extui %0 : i1 to i32
    %c0_i32_0 = arith.constant 0 : i32
    %2 = arith.cmpi ne, %1, %c0_i32_0 : i32
    scf.if %2 {
      %cst_33 = arith.constant 0xFF800000 : f32
      %62 = vector.broadcast %cst_33 : f32 to vector<128x1xf32>
      %c0_34 = arith.constant 0 : index
      %c0_35 = arith.constant 0 : index
      %63 = vector.load %arg7[%c0_34, %c0_35] : memref<128x1xf32, #tpu.memory_space<vmem>>, vector<128x1xf32>
      tpu.vector_store %arg7[%c0_34, %c0_35], %62 {strides = array<i32>} : memref<128x1xf32, #tpu.memory_space<vmem>>, vector<128x1xf32>,
      %cst_36 = arith.constant 0.000000e+00 : f32
      %64 = vector.broadcast %cst_36 : f32 to vector<128x1xf32>
      %c0_37 = arith.constant 0 : index
      %c0_38 = arith.constant 0 : index
      %65 = vector.load %arg8[%c0_37, %c0_38] : memref<128x1xf32, #tpu.memory_space<vmem>>, vector<128x1xf32>
      tpu.vector_store %arg8[%c0_37, %c0_38], %64 {strides = array<i32>} : memref<128x1xf32, #tpu.memory_space<vmem>>, vector<128x1xf32>,
      %cst_39 = arith.constant 0.000000e+00 : f32
      %66 = vector.broadcast %cst_39 : f32 to vector<128x1xf32>
      %c0_40 = arith.constant 0 : index
      %c0_41 = arith.constant 0 : index
      %67 = vector.load %arg9[%c0_40, %c0_41] : memref<128x1xf32, #tpu.memory_space<vmem>>, vector<128x1xf32>
      tpu.vector_store %arg9[%c0_40, %c0_41], %66 {strides = array<i32>} : memref<128x1xf32, #tpu.memory_space<vmem>>, vector<128x1xf32>,
      %cst_42 = arith.constant 0.000000e+00 : f32
      %68 = vector.broadcast %cst_42 : f32 to vector<128x1xf32>
      %c0_43 = arith.constant 0 : index
      %c0_44 = arith.constant 0 : index
      %69 = vector.load %arg10[%c0_43, %c0_44] : memref<128x1xf32, #tpu.memory_space<vmem>>, vector<128x1xf32>
      tpu.vector_store %arg10[%c0_43, %c0_44], %68 {strides = array<i32>} : memref<128x1xf32, #tpu.memory_space<vmem>>, vector<128x1xf32>,
    } else {
    }
    %c0 = arith.constant 0 : index
    %c0_1 = arith.constant 0 : index
    %c0_2 = arith.constant 0 : index
    %3 = vector.load %arg2[%c0, %c0_1, %c0_2] : memref<1x128x128xf32, #tpu.memory_space<vmem>>, vector<1x128x128xf32>
    %4 = vector.shape_cast %3 : vector<1x128x128xf32> to vector<128x128xf32>
    %c128_i32 = arith.constant 128 : i32
    %5 = arith.muli %arg1, %c128_i32 : i32
    %6 = tpu.iota {dimensions = array<i32: 1>} : vector<1x128xi32>
    %7 = vector.broadcast %5 : i32 to vector<1x128xi32>
    %8 = arith.addi %7, %6 : vector<1x128xi32>
    %c320_i32 = arith.constant 320 : i32
    %9 = vector.broadcast %c320_i32 : i32 to vector<1x128xi32>
    %10 = arith.cmpi slt, %8, %9 : vector<1x128xi32>
    %cst = arith.constant 0.000000e+00 : f32
    %11 = vector.shape_cast %10 : vector<1x128xi1> to vector<1x128xi1>
    %12 = vector.broadcast %11 : vector<1x128xi1> to vector<128x128xi1>
    %13 = vector.broadcast %cst : f32 to vector<128x128xf32>
    %14 = arith.select %12, %4, %13 : vector<128x128xi1>, vector<128x128xf32>
    %15 = arith.truncf %14 : vector<128x128xf32> to vector<128x128xbf16>
    %c0_3 = arith.constant 0 : index
    %c0_4 = arith.constant 0 : index
    %16 = vector.load %arg3[%c0_3, %c0_4] : memref<128x128xbf16, #tpu.memory_space<vmem>>, vector<128x128xbf16>
    %cst_5 = arith.constant dense<0.000000e+00> : vector<128x128xf32>
    %17 = tpu.matmul %16, %15, %cst_5 {dimension_numbers = #tpu.dot_dimension_numbers<[1], [0], [0], [1], [0, 0, 1, 1], [], []>} : vector<128x128xbf16>, vector<128x128xbf16>, vector<128x128xf32> -> vector<128x128xf32>
    %c0_6 = arith.constant 0 : index
    %c0_7 = arith.constant 0 : index
    %18 = vector.load %arg4[%c0_6, %c0_7] : memref<128x1xf32, #tpu.memory_space<vmem>>, vector<128x1xf32>
    %19 = vector.broadcast %18 : vector<128x1xf32> to vector<128x128xf32>
    %20 = arith.addf %17, %19 : vector<128x128xf32>
    %21 = math.tanh %20 : vector<128x128xf32>
    %c0_8 = arith.constant 0 : index
    %c0_9 = arith.constant 0 : index
    %22 = vector.load %arg5[%c0_8, %c0_9] : memref<128x128xbf16, #tpu.memory_space<vmem>>, vector<128x128xbf16>
    %23 = arith.truncf %21 : vector<128x128xf32> to vector<128x128xbf16>
    %cst_10 = arith.constant dense<0.000000e+00> : vector<128x128xf32>
    %24 = tpu.matmul %22, %23, %cst_10 {dimension_numbers = #tpu.dot_dimension_numbers<[1], [0], [0], [1], [0, 0, 1, 1], [], []>} : vector<128x128xbf16>, vector<128x128xbf16>, vector<128x128xf32> -> vector<128x128xf32>
    %cst_11 = arith.constant 0xFF800000 : f32
    %25 = vector.shape_cast %10 : vector<1x128xi1> to vector<1x128xi1>
    %26 = vector.broadcast %25 : vector<1x128xi1> to vector<128x128xi1>
    %27 = vector.broadcast %cst_11 : f32 to vector<128x128xf32>
    %28 = arith.select %26, %24, %27 : vector<128x128xi1>, vector<128x128xf32>
    %c0_12 = arith.constant 0 : index
    %c0_13 = arith.constant 0 : index
    %29 = vector.load %arg7[%c0_12, %c0_13] : memref<128x1xf32, #tpu.memory_space<vmem>>, vector<128x1xf32>
    %cst_14 = arith.constant dense<0xFF800000> : vector<128xf32>
    %30 = vector.multi_reduction <maximumf>, %28, %cst_14 [1] : vector<128x128xf32> to vector<128xf32>
    %31 = vector.shape_cast %30 : vector<128xf32> to vector<128x1xf32>
    %32 = arith.maximumf %29, %31 : vector<128x1xf32>
    %33 = arith.subf %29, %32 : vector<128x1xf32>
    %34 = math.exp %33 : vector<128x1xf32>
    %35 = vector.broadcast %32 : vector<128x1xf32> to vector<128x128xf32>
    %36 = arith.subf %28, %35 : vector<128x128xf32>
    %37 = math.exp %36 : vector<128x128xf32>
    %38 = arith.mulf %37, %14 : vector<128x128xf32>
    %c0_15 = arith.constant 0 : index
    %c0_16 = arith.constant 0 : index
    %39 = vector.load %arg8[%c0_15, %c0_16] : memref<128x1xf32, #tpu.memory_space<vmem>>, vector<128x1xf32>
    %40 = arith.mulf %34, %39 : vector<128x1xf32>
    %cst_17 = arith.constant dense<0.000000e+00> : vector<128xf32>
    %41 = vector.multi_reduction <add>, %37, %cst_17 [1] : vector<128x128xf32> to vector<128xf32>
    %42 = vector.shape_cast %41 : vector<128xf32> to vector<128x1xf32>
    %43 = arith.addf %40, %42 : vector<128x1xf32>
    %c0_18 = arith.constant 0 : index
    %c0_19 = arith.constant 0 : index
    %44 = vector.load %arg8[%c0_18, %c0_19] : memref<128x1xf32, #tpu.memory_space<vmem>>, vector<128x1xf32>
    tpu.vector_store %arg8[%c0_18, %c0_19], %43 {strides = array<i32>} : memref<128x1xf32, #tpu.memory_space<vmem>>, vector<128x1xf32>,
    %c0_20 = arith.constant 0 : index
    %c0_21 = arith.constant 0 : index
    %45 = vector.load %arg9[%c0_20, %c0_21] : memref<128x1xf32, #tpu.memory_space<vmem>>, vector<128x1xf32>
    %46 = arith.mulf %34, %45 : vector<128x1xf32>
    %cst_22 = arith.constant dense<0.000000e+00> : vector<128xf32>
    %47 = vector.multi_reduction <add>, %38, %cst_22 [1] : vector<128x128xf32> to vector<128xf32>
    %48 = vector.shape_cast %47 : vector<128xf32> to vector<128x1xf32>
    %49 = arith.addf %46, %48 : vector<128x1xf32>
    %c0_23 = arith.constant 0 : index
    %c0_24 = arith.constant 0 : index
    %50 = vector.load %arg9[%c0_23, %c0_24] : memref<128x1xf32, #tpu.memory_space<vmem>>, vector<128x1xf32>
    tpu.vector_store %arg9[%c0_23, %c0_24], %49 {strides = array<i32>} : memref<128x1xf32, #tpu.memory_space<vmem>>, vector<128x1xf32>,
    %c0_25 = arith.constant 0 : index
    %c0_26 = arith.constant 0 : index
    %51 = vector.load %arg10[%c0_25, %c0_26] : memref<128x1xf32, #tpu.memory_space<vmem>>, vector<128x1xf32>
    %52 = arith.mulf %34, %51 : vector<128x1xf32>
    %53 = arith.mulf %38, %14 : vector<128x128xf32>
    %cst_27 = arith.constant dense<0.000000e+00> : vector<128xf32>
    %54 = vector.multi_reduction <add>, %53, %cst_27 [1] : vector<128x128xf32> to vector<128xf32>
    %55 = vector.shape_cast %54 : vector<128xf32> to vector<128x1xf32>
    %56 = arith.addf %52, %55 : vector<128x1xf32>
    %c0_28 = arith.constant 0 : index
    %c0_29 = arith.constant 0 : index
    %57 = vector.load %arg10[%c0_28, %c0_29] : memref<128x1xf32, #tpu.memory_space<vmem>>, vector<128x1xf32>
    tpu.vector_store %arg10[%c0_28, %c0_29], %56 {strides = array<i32>} : memref<128x1xf32, #tpu.memory_space<vmem>>, vector<128x1xf32>,
    %c0_30 = arith.constant 0 : index
    %c0_31 = arith.constant 0 : index
    %58 = vector.load %arg7[%c0_30, %c0_31] : memref<128x1xf32, #tpu.memory_space<vmem>>, vector<128x1xf32>
    tpu.vector_store %arg7[%c0_30, %c0_31], %32 {strides = array<i32>} : memref<128x1xf32, #tpu.memory_space<vmem>>, vector<128x1xf32>,
    %c2_i32 = arith.constant 2 : i32
    %59 = arith.cmpi eq, %arg1, %c2_i32 : i32
    %60 = arith.extui %59 : i1 to i32
    %c0_i32_32 = arith.constant 0 : i32
    %61 = arith.cmpi ne, %60, %c0_i32_32 : i32
    scf.if %61 {
      %c0_33 = arith.constant 0 : index
      %c0_34 = arith.constant 0 : index
      %62 = vector.load %arg8[%c0_33, %c0_34] : memref<128x1xf32, #tpu.memory_space<vmem>>, vector<128x1xf32>
      %cst_35 = arith.constant 1.000000e+00 : f32
      %63 = vector.broadcast %cst_35 : f32 to vector<128x1xf32>
      %64 = arith.divf %63, %62 : vector<128x1xf32>
      %c0_36 = arith.constant 0 : index
      %c0_37 = arith.constant 0 : index
      %65 = vector.load %arg9[%c0_36, %c0_37] : memref<128x1xf32, #tpu.memory_space<vmem>>, vector<128x1xf32>
      %66 = arith.mulf %65, %64 : vector<128x1xf32>
      %c0_38 = arith.constant 0 : index
      %c0_39 = arith.constant 0 : index
      %67 = vector.load %arg10[%c0_38, %c0_39] : memref<128x1xf32, #tpu.memory_space<vmem>>, vector<128x1xf32>
      %68 = arith.mulf %67, %64 : vector<128x1xf32>
      %69 = arith.mulf %66, %66 : vector<128x1xf32>
      %70 = arith.subf %68, %69 : vector<128x1xf32>
      %cst_40 = arith.constant 9.99999971E-10 : f32
      %71 = vector.broadcast %cst_40 : f32 to vector<128x1xf32>
      %72 = arith.maximumf %70, %71 : vector<128x1xf32>
      %73 = math.sqrt %72 : vector<128x1xf32>
      %c0_41 = arith.constant 0 : index
      %c0_42 = arith.constant 0 : index
      %c0_43 = arith.constant 0 : index
      %74 = vector.load %arg6[%c0_41, %c0_42, %c0_43] : memref<1x256x1xf32, #tpu.memory_space<vmem>>, vector<1x128x1xf32>
      %75 = vector.shape_cast %74 : vector<1x128x1xf32> to vector<128x1xf32>
      %76 = vector.shape_cast %66 : vector<128x1xf32> to vector<1x128x1xf32>
      tpu.vector_store %arg6[%c0_41, %c0_42, %c0_43], %76 {strides = array<i32>} : memref<1x256x1xf32, #tpu.memory_space<vmem>>, vector<1x128x1xf32>,
      %c0_44 = arith.constant 0 : index
      %c128 = arith.constant 128 : index
      %c0_45 = arith.constant 0 : index
      %77 = vector.load %arg6[%c0_44, %c128, %c0_45] : memref<1x256x1xf32, #tpu.memory_space<vmem>>, vector<1x128x1xf32>
      %78 = vector.shape_cast %77 : vector<1x128x1xf32> to vector<128x1xf32>
      %79 = vector.shape_cast %73 : vector<128x1xf32> to vector<1x128x1xf32>
      tpu.vector_store %arg6[%c0_44, %c128, %c0_45], %79 {strides = array<i32>} : memref<1x256x1xf32, #tpu.memory_space<vmem>>, vector<1x128x1xf32>,
    } else {
    }
    return
  }
  func.func @transform_0(%arg0: i32, %arg1: i32) -> (i32, i32, i32) {
    %c0_i32 = arith.constant 0 : i32
    %c0_i32_0 = arith.constant 0 : i32
    return %arg0, %c0_i32, %arg1 : i32, i32, i32
  }
  func.func @transform_1(%arg0: i32, %arg1: i32) -> (i32, i32) {
    %c0_i32 = arith.constant 0 : i32
    %c0_i32_0 = arith.constant 0 : i32
    %c0_i32_1 = arith.constant 0 : i32
    return %c0_i32, %c0_i32_0 : i32, i32
  }
  func.func @transform_2(%arg0: i32, %arg1: i32) -> (i32, i32) {
    %c0_i32 = arith.constant 0 : i32
    %c0_i32_0 = arith.constant 0 : i32
    %c0_i32_1 = arith.constant 0 : i32
    return %c0_i32, %c0_i32_0 : i32, i32
  }
  func.func @transform_3(%arg0: i32, %arg1: i32) -> (i32, i32) {
    %c0_i32 = arith.constant 0 : i32
    %c0_i32_0 = arith.constant 0 : i32
    %c0_i32_1 = arith.constant 0 : i32
    return %c0_i32, %c0_i32_0 : i32, i32
  }
  func.func @transform_4(%arg0: i32, %arg1: i32) -> (i32, i32, i32) {
    %c0_i32 = arith.constant 0 : i32
    %c0_i32_0 = arith.constant 0 : i32
    %c0_i32_1 = arith.constant 0 : i32
    return %arg0, %c0_i32, %c0_i32_0 : i32, i32, i32
  }
}

</mosaic_0001>

<llo_original>
// kernel: tpu_custom_call.1
$region0: #{tpu_custom_call.1}
  #allocation0 [shape = 'u32[]', space=smem, size = 0x4, offset = 0x4, fixed_abs, tag = 'smem constant byte address 0x4 - core index']
  #allocation1 [shape = 'u32[72,128]{1,0:T(1,128)}', space=vmem, size = 0x9000, scoped, tag = 'internal scratch']
  #allocation2 [shape = 'f32[128,1]{1,0:T(8,128)}', space=vmem, size = 0x10000, scoped, tag = 'scratch operand']
  #allocation3 [shape = 'f32[128,1]{1,0:T(8,128)}', space=vmem, size = 0x10000, scoped, tag = 'scratch operand']
  #allocation4 [shape = 'f32[128,1]{1,0:T(8,128)}', space=vmem, size = 0x10000, scoped, tag = 'scratch operand']
  #allocation5 [shape = 'f32[128,1]{1,0:T(8,128)}', space=vmem, size = 0x10000, scoped, tag = 'scratch operand']
  %s0 = inlined_call_operand.vmem [shape: f32[2,128,320], index: 0, kind: input, shape index: {}]
  %s1 = inlined_call_operand.vmem [shape: bf16[128,128], index: 1, kind: input, shape index: {}]
  %s2 = inlined_call_operand.vmem [shape: f32[128,1], index: 2, kind: input, shape index: {}]
  %s3 = inlined_call_operand.vmem [shape: bf16[128,128], index: 3, kind: input, shape index: {}]
  %s4 = inlined_call_operand.vmem [shape: f32[2,256,1], index: 4, kind: output, shape index: {}]
  %s5 = sld [smem:[#allocation0]]
  $region95: #{tpu_custom_call.1} parent=0
    _
  %s7 = ssub.s32 1, %s5
  %s8 = scalar_select 0, %s7, %s5
  $region1: #{tpu_custom_call.1} parent=0
    #allocation6 [shape = 'u8[131072]{0}', space=vmem, size = 0x20000, scoped, tag = 'input window, operand 0']
    loop: start=0, step=1, limit=8
    $region2: #{tpu_custom_call.1} parent=1 // loop_pre_header
      _
    $region3: #{tpu_custom_call.1} parent=1 // loop_header
      %s10 = sphi 0, %s14
      %p11 = scmp.ge.s32.totalorder %s10, 8
      %s17 = sphi 0, %s29
      %s18 = sphi 0, %s25
      %s19 = sphi 0, %s17
      %s20 = sphi 0, %s18
      %s21 = sphi 0, %s19
      %s22 = sphi 0, %s20
      %s34 = sphi 0, %s36
      %s37 = sphi 0, %s34
      %s38 = sphi 0, %s37
      %s54 = sphi 0, %s38
      %s58 = sphi 0, %s58
      %s60 = sphi 0, %s58
      %s61 = sphi 0, %s60
      %s75 = sphi 0, %s61
      %s79 = sphi 0, %s79
      %s81 = sphi 0, %s79
      %s82 = sphi 0, %s81
      %s96 = sphi 0, %s82
      %s100 = sphi 0, %s100
      %s102 = sphi 0, %s100
      %s103 = sphi 0, %s102
      %s117 = sphi 0, %s103
      %s123 = sphi 0, %s125
      %s126 = sphi 0, %s123
      %s127 = sphi 0, %s126
      %s143 = sphi 0, %s127
    $region4: #{tpu_custom_call.1} parent=1 // loop_header_branch
      %13 = sbr.rel (%p11) target = $region8
    $region5: #{tpu_custom_call.1} parent=1 // loop_body
      %s15 = ssub.s32 %s10, 1
      %s16 = ssub.s32 %s10, 2
      %s23 = sadd.s32 1, %s18
      %p24 = scmp.ge.s32.totalorder %s23, 3
      %s25 = scalar_select %p24, 0, %s23
      %s26 = sadd.s32 1, %s17
      %s27 = scalar_select %p24, %s26, %s17
      %p28 = scmp.ge.s32.totalorder %s27, 2
      %s29 = scalar_select %p28, 0, %s27
      %s30 = ssub.s32 %s17, %s29
      %s31 = ssub.s32 %s18, %s25
      %s32 = sor.u32 %s30, %s31
      %p33 = scmp.eq.s32.totalorder %s32, 0
      %s35 = sadd.s32 %s34, 1
      %s36 = scalar_select %p33, %s34, %s35
      %p39 = pneg %p33
      %p40 = scmp.eq.s32.totalorder %s10, 5
      %p41 = por %p39, %p40
      %p42 = scmp.ne.s32.totalorder %s34, %s37
      %p43 = scmp.eq.s32.totalorder %s10, 0
      %p44 = por %p42, %p43
      %p45 = scmp.ne.s32.totalorder %s34, %s37
      %p46 = scmp.eq.s32.totalorder %s15, 5
      %p47 = por %p45, %p46
      %p48 = scmp.ne.s32.totalorder %s37, %s38
      %p49 = scmp.eq.s32.totalorder %s15, 0
      %p50 = por %p48, %p49
      %p51 = scmp.ne.s32.totalorder %s37, %s38
      %p52 = scmp.eq.s32.totalorder %s16, 5
      %p53 = por %p51, %p52
      %p55 = scmp.ne.s32.totalorder %s38, %s54
      %p56 = scmp.eq.s32.totalorder %s16, 0
      %p57 = por %p55, %p56
      %s59 = sadd.s32 %s58, 1
      %p62 = scmp.eq.s32.totalorder %s10, 5
      %p63 = scmp.ne.s32.totalorder %s58, %s60
      %p64 = scmp.eq.s32.totalorder %s10, 0
      %p65 = por %p63, %p64
      %p66 = scmp.ne.s32.totalorder %s58, %s60
      %p67 = scmp.eq.s32.totalorder %s15, 5
      %p68 = por %p66, %p67
      %p69 = scmp.ne.s32.totalorder %s60, %s61
      %p70 = scmp.eq.s32.totalorder %s15, 0
      %p71 = por %p69, %p70
      %p72 = scmp.ne.s32.totalorder %s60, %s61
      %p73 = scmp.eq.s32.totalorder %s16, 5
      %p74 = por %p72, %p73
      %p76 = scmp.ne.s32.totalorder %s61, %s75
      %p77 = scmp.eq.s32.totalorder %s16, 0
      %p78 = por %p76, %p77
      %s80 = sadd.s32 %s79, 1
      %p83 = scmp.eq.s32.totalorder %s10, 5
      %p84 = scmp.ne.s32.totalorder %s79, %s81
      %p85 = scmp.eq.s32.totalorder %s10, 0
      %p86 = por %p84, %p85
      %p87 = scmp.ne.s32.totalorder %s79, %s81
      %p88 = scmp.eq.s32.totalorder %s15, 5
      %p89 = por %p87, %p88
      %p90 = scmp.ne.s32.totalorder %s81, %s82
      %p91 = scmp.eq.s32.totalorder %s15, 0
      %p92 = por %p90, %p91
      %p93 = scmp.ne.s32.totalorder %s81, %s82
      %p94 = scmp.eq.s32.totalorder %s16, 5
      %p95 = por %p93, %p94
      %p97 = scmp.ne.s32.totalorder %s82, %s96
      %p98 = scmp.eq.s32.totalorder %s16, 0
      %p99 = por %p97, %p98
      %s101 = sadd.s32 %s100, 1
      %p104 = scmp.eq.s32.totalorder %s10, 5
      %p105 = scmp.ne.s32.totalorder %s100, %s102
      %p106 = scmp.eq.s32.totalorder %s10, 0
      %p107 = por %p105, %p106
      %p108 = scmp.ne.s32.totalorder %s100, %s102
      %p109 = scmp.eq.s32.totalorder %s15, 5
      %p110 = por %p108, %p109
      %p111 = scmp.ne.s32.totalorder %s102, %s103
      %p112 = scmp.eq.s32.totalorder %s15, 0
      %p113 = por %p111, %p112
      %p114 = scmp.ne.s32.totalorder %s102, %s103
      %p115 = scmp.eq.s32.totalorder %s16, 5
      %p116 = por %p114, %p115
      %p118 = scmp.ne.s32.totalorder %s103, %s117
      %p119 = scmp.eq.s32.totalorder %s16, 0
      %p120 = por %p118, %p119
      %s121 = ssub.s32 %s17, %s29
      %p122 = scmp.eq.s32.totalorder %s121, 0
      %s124 = sadd.s32 %s123, 1
      %s125 = scalar_select %p122, %s123, %s124
      %p128 = pneg %p122
      %p129 = scmp.eq.s32.totalorder %s10, 5
      %p130 = por %p128, %p129
      %p131 = scmp.ne.s32.totalorder %s123, %s126
      %p132 = scmp.eq.s32.totalorder %s10, 0
      %p133 = por %p131, %p132
      %p134 = scmp.ne.s32.totalorder %s123, %s126
      %p135 = scmp.eq.s32.totalorder %s15, 5
      %p136 = por %p134, %p135
      %p137 = scmp.ne.s32.totalorder %s126, %s127
      %p138 = scmp.eq.s32.totalorder %s15, 0
      %p139 = por %p137, %p138
      %p140 = scmp.ne.s32.totalorder %s126, %s127
      %p141 = scmp.eq.s32.totalorder %s16, 5
      %p142 = por %p140, %p141
      %p144 = scmp.ne.s32.totalorder %s127, %s143
      %p145 = scmp.eq.s32.totalorder %s16, 0
      %p146 = por %p144, %p145
      %p147 = scmp.le.s32.totalorder 1, %s10
      %p148 = scmp.lt.s32.totalorder %s10, 7
      %p149 = pnand %p147, %p148
      %p150 = pneg %p149
      // Predicated region
      $region9: #{tpu_custom_call.1} parent=5 // pred_check
        _
      $region10: #{tpu_custom_call.1} parent=5 // pred_check_branch
        %152 = sbr.rel (%p149) target = $region12
      $region11: #{tpu_custom_call.1} parent=5 // pred_region
        %s153 = ssub.s32 %s10, 1
        // Predicated region
        $region13: #{tpu_custom_call.1} parent=11 // pred_check
          %p154 = pneg %p71
        $region14: #{tpu_custom_call.1} parent=11 // pred_check_branch
          %156 = sbr.rel (%p154) target = $region16
        $region15: #{tpu_custom_call.1} parent=11 // pred_region
          _
        $region16: #{tpu_custom_call.1} parent=11 // pred_fallthru
          _
        // Predicated region
        $region17: #{tpu_custom_call.1} parent=11 // pred_check
          %p157 = pneg %p92
        $region18: #{tpu_custom_call.1} parent=11 // pred_check_branch
          %159 = sbr.rel (%p157) target = $region20
        $region19: #{tpu_custom_call.1} parent=11 // pred_region
          _
        $region20: #{tpu_custom_call.1} parent=11 // pred_fallthru
          _
        // Predicated region
        $region21: #{tpu_custom_call.1} parent=11 // pred_check
          %p160 = pneg %p113
        $region22: #{tpu_custom_call.1} parent=11 // pred_check_branch
          %162 = sbr.rel (%p160) target = $region24
        $region23: #{tpu_custom_call.1} parent=11 // pred_region
          _
        $region24: #{tpu_custom_call.1} parent=11 // pred_fallthru
          _
      $region12: #{tpu_custom_call.1} parent=5 // pred_fallthru
        _
      %p163 = scmp.lt.s32.totalorder %s10, 6
      // Predicated region
      $region25: #{tpu_custom_call.1} parent=5 // pred_check
        %p164 = pneg %p163
      $region26: #{tpu_custom_call.1} parent=5 // pred_check_branch
        %166 = sbr.rel (%p164) target = $region28
      $region27: #{tpu_custom_call.1} parent=5 // pred_region
        // Predicated region
        $region29: #{tpu_custom_call.1} parent=27 // pred_check
          %p167 = pneg %p44
        $region30: #{tpu_custom_call.1} parent=27 // pred_check_branch
          %169 = sbr.rel (%p167) target = $region32
        $region31: #{tpu_custom_call.1} parent=27 // pred_region
          %s170 = sand.u32 %s34, 1
          %s171 = sand.u32 %s34, 1
          %s172 = smul.addr %s171, 128
          %s173 = scalar_lea.vmem [#allocation6], %s172
          %s174 = smul.addr %s17, 48
          %s175 = sadd.s32 %s18, %s174
          %s176 = smul.addr %s175, 8
          %s177 = scalar_lea.vmem %s0, %s176
          // Predicated region
          $region33: #{tpu_custom_call.1} parent=31 // pred_check
            _
          $region34: #{tpu_custom_call.1} parent=31 // pred_check_branch
            %179 = sbr.rel (0) target = $region36
          $region35: #{tpu_custom_call.1} parent=31 // pred_region
            // Predicated region
            $region37: #{tpu_custom_call.1} parent=35 // pred_check
              _
            $region38: #{tpu_custom_call.1} parent=35 // pred_check_branch
              %181 = sbr.rel (0) target = $region40
            $region39: #{tpu_custom_call.1} parent=35 // pred_region
              // Predicated region
              $region52: #{tpu_custom_call.1} parent=39 // pred_check
                _
              $region53: #{tpu_custom_call.1} parent=39 // pred_check_branch
                %227 = sbr.rel (0) target = $region55
              $region54: #{tpu_custom_call.1} parent=39 // pred_region
                loop: start=0, step=1, limit=1
                $region56: #{tpu_custom_call.1} parent=54 // loop_pre_header
                  _
                $region57: #{tpu_custom_call.1} parent=54 // loop_header
                  %s229 = sphi 0, %s233
                  %p230 = scmp.ge.s32.totalorder %s229, 1
                  %s234 = sphi %s177, %s177
                  %s235 = sphi %s173, %s173
                $region58: #{tpu_custom_call.1} parent=54 // loop_header_branch
                  %232 = sbr.rel (%p230) target = $region62
                $region59: #{tpu_custom_call.1} parent=54 // loop_body
                  %v236 = vld [vmem:[%s234] sm:$0xff]
                  %237 = vst [vmem:[%s235] sm:$0xff] %v236
                  %v238 = vld [vmem:[%s234 + $0x18] sm:$0xff]
                  %239 = vst [vmem:[%s235 + $0x8] sm:$0xff] %v238
                  %v240 = vld [vmem:[%s234 + $0x30] sm:$0xff]
                  %241 = vst [vmem:[%s235 + $0x10] sm:$0xff] %v240
                  %v242 = vld [vmem:[%s234 + $0x48] sm:$0xff]
                  %243 = vst [vmem:[%s235 + $0x18] sm:$0xff] %v242
                  %v244 = vld [vmem:[%s234 + $0x60] sm:$0xff]
                  %245 = vst [vmem:[%s235 + $0x20] sm:$0xff] %v244
                  %v246 = vld [vmem:[%s234 + $0x78] sm:$0xff]
                  %247 = vst [vmem:[%s235 + $0x28] sm:$0xff] %v246
                  %v248 = vld [vmem:[%s234 + $0x90] sm:$0xff]
                  %249 = vst [vmem:[%s235 + $0x30] sm:$0xff] %v248
                  %v250 = vld [vmem:[%s234 + $0xa8] sm:$0xff]
                  %251 = vst [vmem:[%s235 + $0x38] sm:$0xff] %v250
                  %v252 = vld [vmem:[%s234 + $0xc0] sm:$0xff]
                  %253 = vst [vmem:[%s235 + $0x40] sm:$0xff] %v252
                  %v254 = vld [vmem:[%s234 + $0xd8] sm:$0xff]
                  %255 = vst [vmem:[%s235 + $0x48] sm:$0xff] %v254
                  %v256 = vld [vmem:[%s234 + $0xf0] sm:$0xff]
                  %257 = vst [vmem:[%s235 + $0x50] sm:$0xff] %v256
                  %v258 = vld [vmem:[%s234 + $0x108] sm:$0xff]
                  %259 = vst [vmem:[%s235 + $0x58] sm:$0xff] %v258
                  %v260 = vld [vmem:[%s234 + $0x120] sm:$0xff]
                  %261 = vst [vmem:[%s235 + $0x60] sm:$0xff] %v260
                  %v262 = vld [vmem:[%s234 + $0x138] sm:$0xff]
                  %263 = vst [vmem:[%s235 + $0x68] sm:$0xff] %v262
                  %v264 = vld [vmem:[%s234 + $0x150] sm:$0xff]
                  %265 = vst [vmem:[%s235 + $0x70] sm:$0xff] %v264
                  %v266 = vld [vmem:[%s234 + $0x168] sm:$0xff]
                  %267 = vst [vmem:[%s235 + $0x78] sm:$0xff] %v266
                $region60: #{tpu_custom_call.1} parent=54 // loop_footer
                  %s233 = sadd.s32 1, %s229
                $region61: #{tpu_custom_call.1} parent=54 // loop_footer_branch
                  %228 = sbr.rel target = $region57
                $region62: #{tpu_custom_call.1} parent=54 // loop_exit
                  _
              $region55: #{tpu_custom_call.1} parent=39 // pred_fallthru
                _
              // Predicated region
              $region63: #{tpu_custom_call.1} parent=39 // pred_check
                _
              $region64: #{tpu_custom_call.1} parent=39 // pred_check_branch
                %269 = sbr.rel target = $region66
              $region65: #{tpu_custom_call.1} parent=39 // pred_region
                _
              $region66: #{tpu_custom_call.1} parent=39 // pred_fallthru
                _
            $region40: #{tpu_custom_call.1} parent=35 // pred_fallthru
              _
            // Predicated region
            $region41: #{tpu_custom_call.1} parent=35 // pred_check
              _
            $region42: #{tpu_custom_call.1} parent=35 // pred_check_branch
              %183 = sbr.rel target = $region44
            $region43: #{tpu_custom_call.1} parent=35 // pred_region
              %s185 = ssub.s32 256, 1
              loop: start=0, step=1, limit=1
              $region45: #{tpu_custom_call.1} parent=43 // loop_pre_header
                _
              $region46: #{tpu_custom_call.1} parent=43 // loop_header
                %s187 = sphi 0, %s191
                %p188 = scmp.ge.s32.totalorder %s187, 1
                %s192 = sphi %s177, %s177
                %s193 = sphi %s173, %s173
              $region47: #{tpu_custom_call.1} parent=43 // loop_header_branch
                %190 = sbr.rel (%p188) target = $region51
              $region48: #{tpu_custom_call.1} parent=43 // loop_body
                %v194 = vld [vmem:[%s192] sm:%s185]
                %195 = vst [vmem:[%s193] sm:%s185] %v194
                %v196 = vld [vmem:[%s192 + $0x18] sm:%s185]
                %197 = vst [vmem:[%s193 + $0x8] sm:%s185] %v196
                %v198 = vld [vmem:[%s192 + $0x30] sm:%s185]
                %199 = vst [vmem:[%s193 + $0x10] sm:%s185] %v198
                %v200 = vld [vmem:[%s192 + $0x48] sm:%s185]
                %201 = vst [vmem:[%s193 + $0x18] sm:%s185] %v200
                %v202 = vld [vmem:[%s192 + $0x60] sm:%s185]
                %203 = vst [vmem:[%s193 + $0x20] sm:%s185] %v202
                %v204 = vld [vmem:[%s192 + $0x78] sm:%s185]
                %205 = vst [vmem:[%s193 + $0x28] sm:%s185] %v204
                %v206 = vld [vmem:[%s192 + $0x90] sm:%s185]
                %207 = vst [vmem:[%s193 + $0x30] sm:%s185] %v206
                %v208 = vld [vmem:[%s192 + $0xa8] sm:%s185]
                %209 = vst [vmem:[%s193 + $0x38] sm:%s185] %v208
                %v210 = vld [vmem:[%s192 + $0xc0] sm:%s185]
                %211 = vst [vmem:[%s193 + $0x40] sm:%s185] %v210
                %v212 = vld [vmem:[%s192 + $0xd8] sm:%s185]
                %213 = vst [vmem:[%s193 + $0x48] sm:%s185] %v212
                %v214 = vld [vmem:[%s192 + $0xf0] sm:%s185]
                %215 = vst [vmem:[%s193 + $0x50] sm:%s185] %v214
                %v216 = vld [vmem:[%s192 + $0x108] sm:%s185]
                %217 = vst [vmem:[%s193 + $0x58] sm:%s185] %v216
                %v218 = vld [vmem:[%s192 + $0x120] sm:%s185]
                %219 = vst [vmem:[%s193 + $0x60] sm:%s185] %v218
                %v220 = vld [vmem:[%s192 + $0x138] sm:%s185]
                %221 = vst [vmem:[%s193 + $0x68] sm:%s185] %v220
                %v222 = vld [vmem:[%s192 + $0x150] sm:%s185]
                %223 = vst [vmem:[%s193 + $0x70] sm:%s185] %v222
                %v224 = vld [vmem:[%s192 + $0x168] sm:%s185]
                %225 = vst [vmem:[%s193 + $0x78] sm:%s185] %v224
              $region49: #{tpu_custom_call.1} parent=43 // loop_footer
                %s191 = sadd.s32 1, %s187
              $region50: #{tpu_custom_call.1} parent=43 // loop_footer_branch
                %186 = sbr.rel target = $region46
              $region51: #{tpu_custom_call.1} parent=43 // loop_exit
                _
            $region44: #{tpu_custom_call.1} parent=35 // pred_fallthru
              _
          $region36: #{tpu_custom_call.1} parent=31 // pred_fallthru
            _
          %270 = vnop
        $region32: #{tpu_custom_call.1} parent=27 // pred_fallthru
          _
      $region28: #{tpu_custom_call.1} parent=5 // pred_fallthru
        _
      %p271 = scmp.le.s32.totalorder 1, %s10
      %p272 = scmp.lt.s32.totalorder %s10, 7
      %p273 = pnand %p271, %p272
      %p274 = pneg %p273
      // Predicated region
      $region67: #{tpu_custom_call.1} parent=5 // pred_check
        _
      $region68: #{tpu_custom_call.1} parent=5 // pred_check_branch
        %276 = sbr.rel (%p273) target = $region70
      $region69: #{tpu_custom_call.1} parent=5 // pred_region
        %s277 = ssub.s32 %s10, 1
        %s278 = sand.u32 %s37, 1
        %s279 = sand.u32 %s37, 1
        %s280 = smul.addr %s279, 128
        %s281 = scalar_lea.vmem [#allocation6], %s280
        // Predicated region
        $region71: #{tpu_custom_call.1} parent=69 // pred_check
          %p282 = pneg %p50
        $region72: #{tpu_custom_call.1} parent=69 // pred_check_branch
          %284 = sbr.rel (%p282) target = $region74
        $region73: #{tpu_custom_call.1} parent=69 // pred_region
          _
        $region74: #{tpu_custom_call.1} parent=69 // pred_fallthru
          _
        %s285 = sand.u32 %s37, 1
        %s286 = sand.u32 %s37, 1
        %s287 = smul.addr %s286, 128
        %s288 = scalar_lea.vmem [#allocation6], %s287
        %p289 = pneg %p50
        %p290 = pneg %p47
        %p291 = pneg %p71
        %p292 = pneg %p68
        %p293 = pneg %p92
        %p294 = pneg %p89
        %p295 = pneg %p113
        %p296 = pneg %p110
        %p297 = pneg %p139
        %p298 = pneg %p136
        %p299 = scmp.lt.s32.totalorder %s19, 1
        %s300 = scalar_select %p299, %s19, 1
        %s301 = smul.addr %s300, 32
        %s302 = smul.addr %s301, 8
        %s303 = scalar_lea.vmem %s4, %s302
        %p304 = scmp.lt.s32.totalorder %s19, 1
        %s305 = scalar_select %p304, %s19, 1
        %s306 = smul.addr %s305, 32
        %s307 = smul.addr %s306, 8
        %s308 = scalar_lea.vmem %s4, %s307
        %p309 = scmp.eq.s32.totalorder %s20, 0
        // Predicated region
        $region75: #{tpu_custom_call.1} parent=69 // pred_check
          %p310 = pneg %p309
        $region76: #{tpu_custom_call.1} parent=69 // pred_check_branch
          %312 = sbr.rel (%p310) target = $region78
        $region77: #{tpu_custom_call.1} parent=69 // pred_region
          %vm313 = vcmask 7168
          %314 = vst.msk [vmem:[#allocation2] sm:$0xff] %vm313, -inf
          %315 = vst.msk [vmem:[#allocation2 + $0x8] sm:$0xff] %vm313, -inf
          %316 = vst.msk [vmem:[#allocation2 + $0x10] sm:$0xff] %vm313, -inf
          %317 = vst.msk [vmem:[#allocation2 + $0x18] sm:$0xff] %vm313, -inf
          %318 = vst.msk [vmem:[#allocation2 + $0x20] sm:$0xff] %vm313, -inf
          %319 = vst.msk [vmem:[#allocation2 + $0x28] sm:$0xff] %vm313, -inf
          %320 = vst.msk [vmem:[#allocation2 + $0x30] sm:$0xff] %vm313, -inf
          %321 = vst.msk [vmem:[#allocation2 + $0x38] sm:$0xff] %vm313, -inf
          %322 = vst.msk [vmem:[#allocation2 + $0x40] sm:$0xff] %vm313, -inf
          %323 = vst.msk [vmem:[#allocation2 + $0x48] sm:$0xff] %vm313, -inf
          %324 = vst.msk [vmem:[#allocation2 + $0x50] sm:$0xff] %vm313, -inf
          %325 = vst.msk [vmem:[#allocation2 + $0x58] sm:$0xff] %vm313, -inf
          %326 = vst.msk [vmem:[#allocation2 + $0x60] sm:$0xff] %vm313, -inf
          %327 = vst.msk [vmem:[#allocation2 + $0x68] sm:$0xff] %vm313, -inf
          %328 = vst.msk [vmem:[#allocation2 + $0x70] sm:$0xff] %vm313, -inf
          %329 = vst.msk [vmem:[#allocation2 + $0x78] sm:$0xff] %vm313, -inf
          %330 = vst.msk [vmem:[#allocation3] sm:$0xff] %vm313, 0.0
          %331 = vst.msk [vmem:[#allocation3 + $0x8] sm:$0xff] %vm313, 0.0
          %332 = vst.msk [vmem:[#allocation3 + $0x10] sm:$0xff] %vm313, 0.0
          %333 = vst.msk [vmem:[#allocation3 + $0x18] sm:$0xff] %vm313, 0.0
          %334 = vst.msk [vmem:[#allocation3 + $0x20] sm:$0xff] %vm313, 0.0
          %335 = vst.msk [vmem:[#allocation3 + $0x28] sm:$0xff] %vm313, 0.0
          %336 = vst.msk [vmem:[#allocation3 + $0x30] sm:$0xff] %vm313, 0.0
          %337 = vst.msk [vmem:[#allocation3 + $0x38] sm:$0xff] %vm313, 0.0
          %338 = vst.msk [vmem:[#allocation3 + $0x40] sm:$0xff] %vm313, 0.0
          %339 = vst.msk [vmem:[#allocation3 + $0x48] sm:$0xff] %vm313, 0.0
          %340 = vst.msk [vmem:[#allocation3 + $0x50] sm:$0xff] %vm313, 0.0
          %341 = vst.msk [vmem:[#allocation3 + $0x58] sm:$0xff] %vm313, 0.0
          %342 = vst.msk [vmem:[#allocation3 + $0x60] sm:$0xff] %vm313, 0.0
          %343 = vst.msk [vmem:[#allocation3 + $0x68] sm:$0xff] %vm313, 0.0
          %344 = vst.msk [vmem:[#allocation3 + $0x70] sm:$0xff] %vm313, 0.0
          %345 = vst.msk [vmem:[#allocation3 + $0x78] sm:$0xff] %vm313, 0.0
          %346 = vst.msk [vmem:[#allocation4] sm:$0xff] %vm313, 0.0
          %347 = vst.msk [vmem:[#allocation4 + $0x8] sm:$0xff] %vm313, 0.0
          %348 = vst.msk [vmem:[#allocation4 + $0x10] sm:$0xff] %vm313, 0.0
          %349 = vst.msk [vmem:[#allocation4 + $0x18] sm:$0xff] %vm313, 0.0
          %350 = vst.msk [vmem:[#allocation4 + $0x20] sm:$0xff] %vm313, 0.0
          %351 = vst.msk [vmem:[#allocation4 + $0x28] sm:$0xff] %vm313, 0.0
          %352 = vst.msk [vmem:[#allocation4 + $0x30] sm:$0xff] %vm313, 0.0
          %353 = vst.msk [vmem:[#allocation4 + $0x38] sm:$0xff] %vm313, 0.0
          %354 = vst.msk [vmem:[#allocation4 + $0x40] sm:$0xff] %vm313, 0.0
          %355 = vst.msk [vmem:[#allocation4 + $0x48] sm:$0xff] %vm313, 0.0
          %356 = vst.msk [vmem:[#allocation4 + $0x50] sm:$0xff] %vm313, 0.0
          %357 = vst.msk [vmem:[#allocation4 + $0x58] sm:$0xff] %vm313, 0.0
          %358 = vst.msk [vmem:[#allocation4 + $0x60] sm:$0xff] %vm313, 0.0
          %359 = vst.msk [vmem:[#allocation4 + $0x68] sm:$0xff] %vm313, 0.0
          %360 = vst.msk [vmem:[#allocation4 + $0x70] sm:$0xff] %vm313, 0.0
          %361 = vst.msk [vmem:[#allocation4 + $0x78] sm:$0xff] %vm313, 0.0
          %362 = vst.msk [vmem:[#allocation5] sm:$0xff] %vm313, 0.0
          %363 = vst.msk [vmem:[#allocation5 + $0x8] sm:$0xff] %vm313, 0.0
          %364 = vst.msk [vmem:[#allocation5 + $0x10] sm:$0xff] %vm313, 0.0
          %365 = vst.msk [vmem:[#allocation5 + $0x18] sm:$0xff] %vm313, 0.0
          %366 = vst.msk [vmem:[#allocation5 + $0x20] sm:$0xff] %vm313, 0.0
          %367 = vst.msk [vmem:[#allocation5 + $0x28] sm:$0xff] %vm313, 0.0
          %368 = vst.msk [vmem:[#allocation5 + $0x30] sm:$0xff] %vm313, 0.0
          %369 = vst.msk [vmem:[#allocation5 + $0x38] sm:$0xff] %vm313, 0.0
          %370 = vst.msk [vmem:[#allocation5 + $0x40] sm:$0xff] %vm313, 0.0
          %371 = vst.msk [vmem:[#allocation5 + $0x48] sm:$0xff] %vm313, 0.0
          %372 = vst.msk [vmem:[#allocation5 + $0x50] sm:$0xff] %vm313, 0.0
          %373 = vst.msk [vmem:[#allocation5 + $0x58] sm:$0xff] %vm313, 0.0
          %374 = vst.msk [vmem:[#allocation5 + $0x60] sm:$0xff] %vm313, 0.0
          %375 = vst.msk [vmem:[#allocation5 + $0x68] sm:$0xff] %vm313, 0.0
          %376 = vst.msk [vmem:[#allocation5 + $0x70] sm:$0xff] %vm313, 0.0
          %377 = vst.msk [vmem:[#allocation5 + $0x78] sm:$0xff] %vm313, 0.0
        $region78: #{tpu_custom_call.1} parent=69 // pred_fallthru
          _
        %v378 = vld [vmem:[%s281] sm:$0xff]
        %v379 = vld [vmem:[%s281 + $0x8] sm:$0xff]
        %v380 = vld [vmem:[%s281 + $0x10] sm:$0xff]
        %v381 = vld [vmem:[%s281 + $0x18] sm:$0xff]
        %v382 = vld [vmem:[%s281 + $0x20] sm:$0xff]
        %v383 = vld [vmem:[%s281 + $0x28] sm:$0xff]
        %v384 = vld [vmem:[%s281 + $0x30] sm:$0xff]
        %v385 = vld [vmem:[%s281 + $0x38] sm:$0xff]
        %v386 = vld [vmem:[%s281 + $0x40] sm:$0xff]
        %v387 = vld [vmem:[%s281 + $0x48] sm:$0xff]
        %v388 = vld [vmem:[%s281 + $0x50] sm:$0xff]
        %v389 = vld [vmem:[%s281 + $0x58] sm:$0xff]
        %v390 = vld [vmem:[%s281 + $0x60] sm:$0xff]
        %v391 = vld [vmem:[%s281 + $0x68] sm:$0xff]
        %v392 = vld [vmem:[%s281 + $0x70] sm:$0xff]
        %v393 = vld [vmem:[%s281 + $0x78] sm:$0xff]
        %s394 = smul.u32 %s20, 128
        %v395 = vlaneseq
        %v396 = vand.u32 %v395, 127
        %v397 = vstv %s394
        %v398 = vadd.s32 %v397, %v396
        %vm399 = vcmp.lt.s32.totalorder %v398, 320
        %v400 = vsel %vm399, 1, 0
        %vm401 = vcmp.eq.s32.totalorder %v400, 1
        %v402 = vsel %vm401, %v378, 0.0
        %v403 = vsel %vm401, %v379, 0.0
        %v404 = vsel %vm401, %v380, 0.0
        %v405 = vsel %vm401, %v381, 0.0
        %v406 = vsel %vm401, %v382, 0.0
        %v407 = vsel %vm401, %v383, 0.0
        %v408 = vsel %vm401, %v384, 0.0
        %v409 = vsel %vm401, %v385, 0.0
        %v410 = vsel %vm401, %v386, 0.0
        %v411 = vsel %vm401, %v387, 0.0
        %v412 = vsel %vm401, %v388, 0.0
        %v413 = vsel %vm401, %v389, 0.0
        %v414 = vsel %vm401, %v390, 0.0
        %v415 = vsel %vm401, %v391, 0.0
        %v416 = vsel %vm401, %v392, 0.0
        %v417 = vsel %vm401, %v393, 0.0
        %v418 = vpack.c.bf16 %v403, %v402
        %v419 = vpack.c.bf16 %v405, %v404
        %v420 = vpack.c.bf16 %v407, %v406
        %v421 = vpack.c.bf16 %v409, %v408
        %v422 = vpack.c.bf16 %v411, %v410
        %v423 = vpack.c.bf16 %v413, %v412
        %v424 = vpack.c.bf16 %v415, %v414
        %v425 = vpack.c.bf16 %v417, %v416
        %v426 = vld [vmem:[%s1] sm:$0xf]
        %v427 = vld [vmem:[%s1 + $0x4] sm:$0xf]
        %v428 = vld [vmem:[%s1 + $0x8] sm:$0xf]
        %v429 = vld [vmem:[%s1 + $0xc] sm:$0xf]
        %v430 = vld [vmem:[%s1 + $0x10] sm:$0xf]
        %v431 = vld [vmem:[%s1 + $0x14] sm:$0xf]
        %v432 = vld [vmem:[%s1 + $0x18] sm:$0xf]
        %v433 = vld [vmem:[%s1 + $0x1c] sm:$0xf]
        %v434 = vld [vmem:[%s1 + $0x20] sm:$0xf]
        %v435 = vld [vmem:[%s1 + $0x24] sm:$0xf]
        %v436 = vld [vmem:[%s1 + $0x28] sm:$0xf]
        %v437 = vld [vmem:[%s1 + $0x2c] sm:$0xf]
        %v438 = vld [vmem:[%s1 + $0x30] sm:$0xf]
        %v439 = vld [vmem:[%s1 + $0x34] sm:$0xf]
        %v440 = vld [vmem:[%s1 + $0x38] sm:$0xf]
        %v441 = vld [vmem:[%s1 + $0x3c] sm:$0xf]
        %v442 = vld [vmem:[%s2] sm:$0xff]
        %v443 = vld [vmem:[%s2 + $0x8] sm:$0xff]
        %v444 = vld [vmem:[%s2 + $0x10] sm:$0xff]
        %v445 = vld [vmem:[%s2 + $0x18] sm:$0xff]
        %v446 = vld [vmem:[%s2 + $0x20] sm:$0xff]
        %v447 = vld [vmem:[%s2 + $0x28] sm:$0xff]
        %v448 = vld [vmem:[%s2 + $0x30] sm:$0xff]
        %v449 = vld [vmem:[%s2 + $0x38] sm:$0xff]
        %v450 = vld [vmem:[%s2 + $0x40] sm:$0xff]
        %v451 = vld [vmem:[%s2 + $0x48] sm:$0xff]
        %v452 = vld [vmem:[%s2 + $0x50] sm:$0xff]
        %v453 = vld [vmem:[%s2 + $0x58] sm:$0xff]
        %v454 = vld [vmem:[%s2 + $0x60] sm:$0xff]
        %v455 = vld [vmem:[%s2 + $0x68] sm:$0xff]
        %v456 = vld [vmem:[%s2 + $0x70] sm:$0xff]
        %v457 = vld [vmem:[%s2 + $0x78] sm:$0xff]
        %459 = vset.pattern.permute.xlu0 0
        %460 = vperm.xlu0 %459, %v442
        %v461 = vpop.permute.xlu0 %460
        %464 = vset.pattern.permute.xlu0 0
        %465 = vperm.xlu0 %464, %v443
        %v466 = vpop.permute.xlu0 %465
        %469 = vset.pattern.permute.xlu0 0
        %470 = vperm.xlu0 %469, %v444
        %v471 = vpop.permute.xlu0 %470
        %474 = vset.pattern.permute.xlu0 0
        %475 = vperm.xlu0 %474, %v445
        %v476 = vpop.permute.xlu0 %475
        %479 = vset.pattern.permute.xlu0 0
        %480 = vperm.xlu0 %479, %v446
        %v481 = vpop.permute.xlu0 %480
        %484 = vset.pattern.permute.xlu0 0
        %485 = vperm.xlu0 %484, %v447
        %v486 = vpop.permute.xlu0 %485
        %489 = vset.pattern.permute.xlu0 0
        %490 = vperm.xlu0 %489, %v448
        %v491 = vpop.permute.xlu0 %490
        %494 = vset.pattern.permute.xlu0 0
        %495 = vperm.xlu0 %494, %v449
        %v496 = vpop.permute.xlu0 %495
        %499 = vset.pattern.permute.xlu0 0
        %500 = vperm.xlu0 %499, %v450
        %v501 = vpop.permute.xlu0 %500
        %504 = vset.pattern.permute.xlu0 0
        %505 = vperm.xlu0 %504, %v451
        %v506 = vpop.permute.xlu0 %505
        %509 = vset.pattern.permute.xlu0 0
        %510 = vperm.xlu0 %509, %v452
        %v511 = vpop.permute.xlu0 %510
        %514 = vset.pattern.permute.xlu0 0
        %515 = vperm.xlu0 %514, %v453
        %v516 = vpop.permute.xlu0 %515
        %519 = vset.pattern.permute.xlu0 0
        %520 = vperm.xlu0 %519, %v454
        %v521 = vpop.permute.xlu0 %520
        %524 = vset.pattern.permute.xlu0 0
        %525 = vperm.xlu0 %524, %v455
        %v526 = vpop.permute.xlu0 %525
        %529 = vset.pattern.permute.xlu0 0
        %530 = vperm.xlu0 %529, %v456
        %v531 = vpop.permute.xlu0 %530
        %534 = vset.pattern.permute.xlu0 0
        %535 = vperm.xlu0 %534, %v457
        %v536 = vpop.permute.xlu0 %535
        %v554 = vunpack.c.l.b16 %v426
        %v555 = vunpack.c.l.b16 %v427
        %v556 = vunpack.c.l.b16 %v428
        %v557 = vunpack.c.l.b16 %v429
        %v558 = vunpack.c.l.b16 %v430
        %v559 = vunpack.c.l.b16 %v431
        %v560 = vunpack.c.l.b16 %v432
        %v561 = vunpack.c.l.b16 %v433
        %v562 = vunpack.c.l.b16 %v434
        %v563 = vunpack.c.l.b16 %v435
        %v564 = vunpack.c.l.b16 %v436
        %v565 = vunpack.c.l.b16 %v437
        %v566 = vunpack.c.l.b16 %v438
        %v567 = vunpack.c.l.b16 %v439
        %v568 = vunpack.c.l.b16 %v440
        %v569 = vunpack.c.l.b16 %v441
        %v570 = vpack.c.b16 %v555, %v554
        %v571 = vpack.c.b16 %v557, %v556
        %v572 = vpack.c.b16 %v559, %v558
        %v573 = vpack.c.b16 %v561, %v560
        %v574 = vpack.c.b16 %v563, %v562
        %v575 = vpack.c.b16 %v565, %v564
        %v576 = vpack.c.b16 %v567, %v566
        %v577 = vpack.c.b16 %v569, %v568
        %586 = vmatpush.bf16.msra.mxu0 %v425
        %587 = vmatpush.bf16.msra.mxu0 %v424
        %588 = vmatpush.bf16.msra.mxu0 %v423
        %589 = vmatpush.bf16.msra.mxu0 %v422
        %590 = vmatpush.bf16.msra.mxu0 %v421
        %591 = vmatpush.bf16.msra.mxu0 %v420
        %592 = vmatpush.bf16.msra.mxu0 %v419
        %593 = vmatpush.bf16.msra.mxu0 %v418
        %594 = vmatmul.bf16.gmra.mxu0 %v570
        %v595 = vpop.f32.mrf.mxu0
        %v596 = vadd.f32 %v461, %v595
        %v597 = vpop.f32.mrf.mxu0
        %v598 = vadd.f32 %v466, %v597
        %599 = vmatmul.bf16.gmra.mxu0 %v571
        %v600 = vpop.f32.mrf.mxu0
        %v601 = vadd.f32 %v471, %v600
        %v602 = vpop.f32.mrf.mxu0
        %v603 = vadd.f32 %v476, %v602
        %604 = vmatmul.bf16.gmra.mxu0 %v572
        %v605 = vpop.f32.mrf.mxu0
        %v606 = vadd.f32 %v481, %v605
        %v607 = vpop.f32.mrf.mxu0
        %v608 = vadd.f32 %v486, %v607
        %609 = vmatmul.bf16.gmra.mxu0 %v573
        %v610 = vpop.f32.mrf.mxu0
        %v611 = vadd.f32 %v491, %v610
        %v612 = vpop.f32.mrf.mxu0
        %v613 = vadd.f32 %v496, %v612
        %614 = vmatmul.bf16.gmra.mxu0 %v574
        %v615 = vpop.f32.mrf.mxu0
        %v616 = vadd.f32 %v501, %v615
        %v617 = vpop.f32.mrf.mxu0
        %v618 = vadd.f32 %v506, %v617
        %619 = vmatmul.bf16.gmra.mxu0 %v575
        %v620 = vpop.f32.mrf.mxu0
        %v621 = vadd.f32 %v511, %v620
        %v622 = vpop.f32.mrf.mxu0
        %v623 = vadd.f32 %v516, %v622
        %624 = vmatmul.bf16.gmra.mxu0 %v576
        %v625 = vpop.f32.mrf.mxu0
        %v626 = vadd.f32 %v521, %v625
        %v627 = vpop.f32.mrf.mxu0
        %v628 = vadd.f32 %v526, %v627
        %629 = vmatmul.bf16.gmra.mxu0 %v577
        %v630 = vpop.f32.mrf.mxu0
        %v631 = vadd.f32 %v531, %v630
        %v632 = vpop.f32.mrf.mxu0
        %v633 = vadd.f32 %v536, %v632
        %634 = vdwg.mxu0
        %v635 = vtanh.pop %v596
        %v636 = vtanh.pop %v598
        %v637 = vtanh.pop %v601
        %v638 = vtanh.pop %v603
        %v639 = vtanh.pop %v606
        %v640 = vtanh.pop %v608
        %v641 = vtanh.pop %v611
        %v642 = vtanh.pop %v613
        %v643 = vtanh.pop %v616
        %v644 = vtanh.pop %v618
        %v645 = vtanh.pop %v621
        %v646 = vtanh.pop %v623
        %v647 = vtanh.pop %v626
        %v648 = vtanh.pop %v628
        %v649 = vtanh.pop %v631
        %v650 = vtanh.pop %v633
        %v651 = vld [vmem:[%s3] sm:$0xf]
        %v652 = vld [vmem:[%s3 + $0x4] sm:$0xf]
        %v653 = vld [vmem:[%s3 + $0x8] sm:$0xf]
        %v654 = vld [vmem:[%s3 + $0xc] sm:$0xf]
        %v655 = vld [vmem:[%s3 + $0x10] sm:$0xf]
        %v656 = vld [vmem:[%s3 + $0x14] sm:$0xf]
        %v657 = vld [vmem:[%s3 + $0x18] sm:$0xf]
        %v658 = vld [vmem:[%s3 + $0x1c] sm:$0xf]
        %v659 = vld [vmem:[%s3 + $0x20] sm:$0xf]
        %v660 = vld [vmem:[%s3 + $0x24] sm:$0xf]
        %v661 = vld [vmem:[%s3 + $0x28] sm:$0xf]
        %v662 = vld [vmem:[%s3 + $0x2c] sm:$0xf]
        %v663 = vld [vmem:[%s3 + $0x30] sm:$0xf]
        %v664 = vld [vmem:[%s3 + $0x34] sm:$0xf]
        %v665 = vld [vmem:[%s3 + $0x38] sm:$0xf]
        %v666 = vld [vmem:[%s3 + $0x3c] sm:$0xf]
        %v667 = vpack.c.bf16 %v636, %v635
        %v668 = vpack.c.bf16 %v638, %v637
        %v669 = vpack.c.bf16 %v640, %v639
        %v670 = vpack.c.bf16 %v642, %v641
        %v671 = vpack.c.bf16 %v644, %v643
        %v672 = vpack.c.bf16 %v646, %v645
        %v673 = vpack.c.bf16 %v648, %v647
        %v674 = vpack.c.bf16 %v650, %v649
        %v691 = vunpack.c.l.b16 %v651
        %v692 = vunpack.c.l.b16 %v652
        %v693 = vunpack.c.l.b16 %v653
        %v694 = vunpack.c.l.b16 %v654
        %v695 = vunpack.c.l.b16 %v655
        %v696 = vunpack.c.l.b16 %v656
        %v697 = vunpack.c.l.b16 %v657
        %v698 = vunpack.c.l.b16 %v658
        %v699 = vunpack.c.l.b16 %v659
        %v700 = vunpack.c.l.b16 %v660
        %v701 = vunpack.c.l.b16 %v661
        %v702 = vunpack.c.l.b16 %v662
        %v703 = vunpack.c.l.b16 %v663
        %v704 = vunpack.c.l.b16 %v664
        %v705 = vunpack.c.l.b16 %v665
        %v706 = vunpack.c.l.b16 %v666
        %v707 = vpack.c.b16 %v692, %v691
        %v708 = vpack.c.b16 %v694, %v693
        %v709 = vpack.c.b16 %v696, %v695
        %v710 = vpack.c.b16 %v698, %v697
        %v711 = vpack.c.b16 %v700, %v699
        %v712 = vpack.c.b16 %v702, %v701
        %v713 = vpack.c.b16 %v704, %v703
        %v714 = vpack.c.b16 %v706, %v705
        %723 = vmatpush.bf16.msra.mxu0 %v674
        %724 = vmatpush.bf16.msra.mxu0 %v673
        %725 = vmatpush.bf16.msra.mxu0 %v672
        %726 = vmatpush.bf16.msra.mxu0 %v671
        %727 = vmatpush.bf16.msra.mxu0 %v670
        %728 = vmatpush.bf16.msra.mxu0 %v669
        %729 = vmatpush.bf16.msra.mxu0 %v668
        %730 = vmatpush.bf16.msra.mxu0 %v667
        %731 = vmatmul.bf16.gmra.mxu0 %v707
        %v732 = vpop.f32.mrf.mxu0
        %v733 = vadd.f32 0.0, %v732
        %v734 = vpop.f32.mrf.mxu0
        %v735 = vadd.f32 0.0, %v734
        %736 = vmatmul.bf16.gmra.mxu0 %v708
        %v737 = vpop.f32.mrf.mxu0
        %v738 = vadd.f32 0.0, %v737
        %v739 = vpop.f32.mrf.mxu0
        %v740 = vadd.f32 0.0, %v739
        %741 = vmatmul.bf16.gmra.mxu0 %v709
        %v742 = vpop.f32.mrf.mxu0
        %v743 = vadd.f32 0.0, %v742
        %v744 = vpop.f32.mrf.mxu0
        %v745 = vadd.f32 0.0, %v744
        %746 = vmatmul.bf16.gmra.mxu0 %v710
        %v747 = vpop.f32.mrf.mxu0
        %v748 = vadd.f32 0.0, %v747
        %v749 = vpop.f32.mrf.mxu0
        %v750 = vadd.f32 0.0, %v749
        %751 = vmatmul.bf16.gmra.mxu0 %v711
        %v752 = vpop.f32.mrf.mxu0
        %v753 = vadd.f32 0.0, %v752
        %v754 = vpop.f32.mrf.mxu0
        %v755 = vadd.f32 0.0, %v754
        %756 = vmatmul.bf16.gmra.mxu0 %v712
        %v757 = vpop.f32.mrf.mxu0
        %v758 = vadd.f32 0.0, %v757
        %v759 = vpop.f32.mrf.mxu0
        %v760 = vadd.f32 0.0, %v759
        %761 = vmatmul.bf16.gmra.mxu0 %v713
        %v762 = vpop.f32.mrf.mxu0
        %v763 = vadd.f32 0.0, %v762
        %v764 = vpop.f32.mrf.mxu0
        %v765 = vadd.f32 0.0, %v764
        %766 = vmatmul.bf16.gmra.mxu0 %v714
        %v767 = vpop.f32.mrf.mxu0
        %v768 = vadd.f32 0.0, %v767
        %v769 = vpop.f32.mrf.mxu0
        %v770 = vadd.f32 0.0, %v769
        %771 = vdwg.mxu0
        %v772 = vsel %vm401, %v733, -inf
        %v773 = vsel %vm401, %v735, -inf
        %v774 = vsel %vm401, %v738, -inf
        %v775 = vsel %vm401, %v740, -inf
        %v776 = vsel %vm401, %v743, -inf
        %v777 = vsel %vm401, %v745, -inf
        %v778 = vsel %vm401, %v748, -inf
        %v779 = vsel %vm401, %v750, -inf
        %v780 = vsel %vm401, %v753, -inf
        %v781 = vsel %vm401, %v755, -inf
        %v782 = vsel %vm401, %v758, -inf
        %v783 = vsel %vm401, %v760, -inf
        %v784 = vsel %vm401, %v763, -inf
        %v785 = vsel %vm401, %v765, -inf
        %v786 = vsel %vm401, %v768, -inf
        %v787 = vsel %vm401, %v770, -inf
        %v788 = vld [vmem:[#allocation2] sm:$0xff]
        %v789 = vld [vmem:[#allocation2 + $0x8] sm:$0xff]
        %v790 = vld [vmem:[#allocation2 + $0x10] sm:$0xff]
        %v791 = vld [vmem:[#allocation2 + $0x18] sm:$0xff]
        %v792 = vld [vmem:[#allocation2 + $0x20] sm:$0xff]
        %v793 = vld [vmem:[#allocation2 + $0x28] sm:$0xff]
        %v794 = vld [vmem:[#allocation2 + $0x30] sm:$0xff]
        %v795 = vld [vmem:[#allocation2 + $0x38] sm:$0xff]
        %v796 = vld [vmem:[#allocation2 + $0x40] sm:$0xff]
        %v797 = vld [vmem:[#allocation2 + $0x48] sm:$0xff]
        %v798 = vld [vmem:[#allocation2 + $0x50] sm:$0xff]
        %v799 = vld [vmem:[#allocation2 + $0x58] sm:$0xff]
        %v800 = vld [vmem:[#allocation2 + $0x60] sm:$0xff]
        %v801 = vld [vmem:[#allocation2 + $0x68] sm:$0xff]
        %v802 = vld [vmem:[#allocation2 + $0x70] sm:$0xff]
        %v803 = vld [vmem:[#allocation2 + $0x78] sm:$0xff]
        %804 = vmax.xlane.f32.xlu0 %v772
        %v805 = vpop.xlane.xlu0 %804
        %806 = vmax.xlane.f32.xlu0 %v773
        %v807 = vpop.xlane.xlu0 %806
        %808 = vmax.xlane.f32.xlu0 %v774
        %v809 = vpop.xlane.xlu0 %808
        %810 = vmax.xlane.f32.xlu0 %v775
        %v811 = vpop.xlane.xlu0 %810
        %812 = vmax.xlane.f32.xlu0 %v776
        %v813 = vpop.xlane.xlu0 %812
        %814 = vmax.xlane.f32.xlu0 %v777
        %v815 = vpop.xlane.xlu0 %814
        %816 = vmax.xlane.f32.xlu0 %v778
        %v817 = vpop.xlane.xlu0 %816
        %818 = vmax.xlane.f32.xlu0 %v779
        %v819 = vpop.xlane.xlu0 %818
        %820 = vmax.xlane.f32.xlu0 %v780
        %v821 = vpop.xlane.xlu0 %820
        %822 = vmax.xlane.f32.xlu0 %v781
        %v823 = vpop.xlane.xlu0 %822
        %824 = vmax.xlane.f32.xlu0 %v782
        %v825 = vpop.xlane.xlu0 %824
        %826 = vmax.xlane.f32.xlu0 %v783
        %v827 = vpop.xlane.xlu0 %826
        %828 = vmax.xlane.f32.xlu0 %v784
        %v829 = vpop.xlane.xlu0 %828
        %830 = vmax.xlane.f32.xlu0 %v785
        %v831 = vpop.xlane.xlu0 %830
        %832 = vmax.xlane.f32.xlu0 %v786
        %v833 = vpop.xlane.xlu0 %832
        %834 = vmax.xlane.f32.xlu0 %v787
        %v835 = vpop.xlane.xlu0 %834
        %v836 = vmax.f32 %v788, %v805
        %v837 = vmax.f32 %v789, %v807
        %v838 = vmax.f32 %v790, %v809
        %v839 = vmax.f32 %v791, %v811
        %v840 = vmax.f32 %v792, %v813
        %v841 = vmax.f32 %v793, %v815
        %v842 = vmax.f32 %v794, %v817
        %v843 = vmax.f32 %v795, %v819
        %v844 = vmax.f32 %v796, %v821
        %v845 = vmax.f32 %v797, %v823
        %v846 = vmax.f32 %v798, %v825
        %v847 = vmax.f32 %v799, %v827
        %v848 = vmax.f32 %v800, %v829
        %v849 = vmax.f32 %v801, %v831
        %v850 = vmax.f32 %v802, %v833
        %v851 = vmax.f32 %v803, %v835
        %v852 = vsub.f32 %v788, %v836
        %v853 = vsub.f32 %v789, %v837
        %v854 = vsub.f32 %v790, %v838
        %v855 = vsub.f32 %v791, %v839
        %v856 = vsub.f32 %v792, %v840
        %v857 = vsub.f32 %v793, %v841
        %v858 = vsub.f32 %v794, %v842
        %v859 = vsub.f32 %v795, %v843
        %v860 = vsub.f32 %v796, %v844
        %v861 = vsub.f32 %v797, %v845
        %v862 = vsub.f32 %v798, %v846
        %v863 = vsub.f32 %v799, %v847
        %v864 = vsub.f32 %v800, %v848
        %v865 = vsub.f32 %v801, %v849
        %v866 = vsub.f32 %v802, %v850
        %v867 = vsub.f32 %v803, %v851
        %v868 = vmul.f32 %v852, 1.442695
        %v869 = vpow.pop %v868
        %v870 = vmul.f32 %v853, 1.442695
        %v871 = vpow.pop %v870
        %v872 = vmul.f32 %v854, 1.442695
        %v873 = vpow.pop %v872
        %v874 = vmul.f32 %v855, 1.442695
        %v875 = vpow.pop %v874
        %v876 = vmul.f32 %v856, 1.442695
        %v877 = vpow.pop %v876
        %v878 = vmul.f32 %v857, 1.442695
        %v879 = vpow.pop %v878
        %v880 = vmul.f32 %v858, 1.442695
        %v881 = vpow.pop %v880
        %v882 = vmul.f32 %v859, 1.442695
        %v883 = vpow.pop %v882
        %v884 = vmul.f32 %v860, 1.442695
        %v885 = vpow.pop %v884
        %v886 = vmul.f32 %v861, 1.442695
        %v887 = vpow.pop %v886
        %v888 = vmul.f32 %v862, 1.442695
        %v889 = vpow.pop %v888
        %v890 = vmul.f32 %v863, 1.442695
        %v891 = vpow.pop %v890
        %v892 = vmul.f32 %v864, 1.442695
        %v893 = vpow.pop %v892
        %v894 = vmul.f32 %v865, 1.442695
        %v895 = vpow.pop %v894
        %v896 = vmul.f32 %v866, 1.442695
        %v897 = vpow.pop %v896
        %v898 = vmul.f32 %v867, 1.442695
        %v899 = vpow.pop %v898
        %901 = vset.pattern.permute.xlu0 0
        %902 = vperm.xlu0 %901, %v836
        %v903 = vpop.permute.xlu0 %902
        %906 = vset.pattern.permute.xlu0 0
        %907 = vperm.xlu0 %906, %v837
        %v908 = vpop.permute.xlu0 %907
        %911 = vset.pattern.permute.xlu0 0
        %912 = vperm.xlu0 %911, %v838
        %v913 = vpop.permute.xlu0 %912
        %916 = vset.pattern.permute.xlu0 0
        %917 = vperm.xlu0 %916, %v839
        %v918 = vpop.permute.xlu0 %917
        %921 = vset.pattern.permute.xlu0 0
        %922 = vperm.xlu0 %921, %v840
        %v923 = vpop.permute.xlu0 %922
        %926 = vset.pattern.permute.xlu0 0
        %927 = vperm.xlu0 %926, %v841
        %v928 = vpop.permute.xlu0 %927
        %931 = vset.pattern.permute.xlu0 0
        %932 = vperm.xlu0 %931, %v842
        %v933 = vpop.permute.xlu0 %932
        %936 = vset.pattern.permute.xlu0 0
        %937 = vperm.xlu0 %936, %v843
        %v938 = vpop.permute.xlu0 %937
        %941 = vset.pattern.permute.xlu0 0
        %942 = vperm.xlu0 %941, %v844
        %v943 = vpop.permute.xlu0 %942
        %946 = vset.pattern.permute.xlu0 0
        %947 = vperm.xlu0 %946, %v845
        %v948 = vpop.permute.xlu0 %947
        %951 = vset.pattern.permute.xlu0 0
        %952 = vperm.xlu0 %951, %v846
        %v953 = vpop.permute.xlu0 %952
        %956 = vset.pattern.permute.xlu0 0
        %957 = vperm.xlu0 %956, %v847
        %v958 = vpop.permute.xlu0 %957
        %961 = vset.pattern.permute.xlu0 0
        %962 = vperm.xlu0 %961, %v848
        %v963 = vpop.permute.xlu0 %962
        %966 = vset.pattern.permute.xlu0 0
        %967 = vperm.xlu0 %966, %v849
        %v968 = vpop.permute.xlu0 %967
        %971 = vset.pattern.permute.xlu0 0
        %972 = vperm.xlu0 %971, %v850
        %v973 = vpop.permute.xlu0 %972
        %976 = vset.pattern.permute.xlu0 0
        %977 = vperm.xlu0 %976, %v851
        %v978 = vpop.permute.xlu0 %977
        %v980 = vsub.f32 %v772, %v903
        %v981 = vsub.f32 %v773, %v908
        %v982 = vsub.f32 %v774, %v913
        %v983 = vsub.f32 %v775, %v918
        %v984 = vsub.f32 %v776, %v923
        %v985 = vsub.f32 %v777, %v928
        %v986 = vsub.f32 %v778, %v933
        %v987 = vsub.f32 %v779, %v938
        %v988 = vsub.f32 %v780, %v943
        %v989 = vsub.f32 %v781, %v948
        %v990 = vsub.f32 %v782, %v953
        %v991 = vsub.f32 %v783, %v958
        %v992 = vsub.f32 %v784, %v963
        %v993 = vsub.f32 %v785, %v968
        %v994 = vsub.f32 %v786, %v973
        %v995 = vsub.f32 %v787, %v978
        %v996 = vmul.f32 %v980, 1.442695
        %v997 = vpow.pop %v996
        %v998 = vmul.f32 %v981, 1.442695
        %v999 = vpow.pop %v998
        %v1000 = vmul.f32 %v982, 1.442695
        %v1001 = vpow.pop %v1000
        %v1002 = vmul.f32 %v983, 1.442695
        %v1003 = vpow.pop %v1002
        %v1004 = vmul.f32 %v984, 1.442695
        %v1005 = vpow.pop %v1004
        %v1006 = vmul.f32 %v985, 1.442695
        %v1007 = vpow.pop %v1006
        %v1008 = vmul.f32 %v986, 1.442695
        %v1009 = vpow.pop %v1008
        %v1010 = vmul.f32 %v987, 1.442695
        %v1011 = vpow.pop %v1010
        %v1012 = vmul.f32 %v988, 1.442695
        %v1013 = vpow.pop %v1012
        %v1014 = vmul.f32 %v989, 1.442695
        %v1015 = vpow.pop %v1014
        %v1016 = vmul.f32 %v990, 1.442695
        %v1017 = vpow.pop %v1016
        %v1018 = vmul.f32 %v991, 1.442695
        %v1019 = vpow.pop %v1018
        %v1020 = vmul.f32 %v992, 1.442695
        %v1021 = vpow.pop %v1020
        %v1022 = vmul.f32 %v993, 1.442695
        %v1023 = vpow.pop %v1022
        %v1024 = vmul.f32 %v994, 1.442695
        %v1025 = vpow.pop %v1024
        %v1026 = vmul.f32 %v995, 1.442695
        %v1027 = vpow.pop %v1026
        %v1028 = vmul.f32 %v997, %v402
        %v1029 = vmul.f32 %v999, %v403
        %v1030 = vmul.f32 %v1001, %v404
        %v1031 = vmul.f32 %v1003, %v405
        %v1032 = vmul.f32 %v1005, %v406
        %v1033 = vmul.f32 %v1007, %v407
        %v1034 = vmul.f32 %v1009, %v408
        %v1035 = vmul.f32 %v1011, %v409
        %v1036 = vmul.f32 %v1013, %v410
        %v1037 = vmul.f32 %v1015, %v411
        %v1038 = vmul.f32 %v1017, %v412
        %v1039 = vmul.f32 %v1019, %v413
        %v1040 = vmul.f32 %v1021, %v414
        %v1041 = vmul.f32 %v1023, %v415
        %v1042 = vmul.f32 %v1025, %v416
        %v1043 = vmul.f32 %v1027, %v417
        %v1044 = vld [vmem:[#allocation3] sm:$0xff]
        %v1045 = vld [vmem:[#allocation3 + $0x8] sm:$0xff]
        %v1046 = vld [vmem:[#allocation3 + $0x10] sm:$0xff]
        %v1047 = vld [vmem:[#allocation3 + $0x18] sm:$0xff]
        %v1048 = vld [vmem:[#allocation3 + $0x20] sm:$0xff]
        %v1049 = vld [vmem:[#allocation3 + $0x28] sm:$0xff]
        %v1050 = vld [vmem:[#allocation3 + $0x30] sm:$0xff]
        %v1051 = vld [vmem:[#allocation3 + $0x38] sm:$0xff]
        %v1052 = vld [vmem:[#allocation3 + $0x40] sm:$0xff]
        %v1053 = vld [vmem:[#allocation3 + $0x48] sm:$0xff]
        %v1054 = vld [vmem:[#allocation3 + $0x50] sm:$0xff]
        %v1055 = vld [vmem:[#allocation3 + $0x58] sm:$0xff]
        %v1056 = vld [vmem:[#allocation3 + $0x60] sm:$0xff]
        %v1057 = vld [vmem:[#allocation3 + $0x68] sm:$0xff]
        %v1058 = vld [vmem:[#allocation3 + $0x70] sm:$0xff]
        %v1059 = vld [vmem:[#allocation3 + $0x78] sm:$0xff]
        %v1060 = vmul.f32 %v869, %v1044
        %v1061 = vmul.f32 %v871, %v1045
        %v1062 = vmul.f32 %v873, %v1046
        %v1063 = vmul.f32 %v875, %v1047
        %v1064 = vmul.f32 %v877, %v1048
        %v1065 = vmul.f32 %v879, %v1049
        %v1066 = vmul.f32 %v881, %v1050
        %v1067 = vmul.f32 %v883, %v1051
        %v1068 = vmul.f32 %v885, %v1052
        %v1069 = vmul.f32 %v887, %v1053
        %v1070 = vmul.f32 %v889, %v1054
        %v1071 = vmul.f32 %v891, %v1055
        %v1072 = vmul.f32 %v893, %v1056
        %v1073 = vmul.f32 %v895, %v1057
        %v1074 = vmul.f32 %v897, %v1058
        %v1075 = vmul.f32 %v899, %v1059
        %1076 = vadd.xlane.f32.xlu0 %v997
        %v1077 = vpop.xlane.xlu0 %1076
        %1078 = vadd.xlane.f32.xlu0 %v999
        %v1079 = vpop.xlane.xlu0 %1078
        %1080 = vadd.xlane.f32.xlu0 %v1001
        %v1081 = vpop.xlane.xlu0 %1080
        %1082 = vadd.xlane.f32.xlu0 %v1003
        %v1083 = vpop.xlane.xlu0 %1082
        %1084 = vadd.xlane.f32.xlu0 %v1005
        %v1085 = vpop.xlane.xlu0 %1084
        %1086 = vadd.xlane.f32.xlu0 %v1007
        %v1087 = vpop.xlane.xlu0 %1086
        %1088 = vadd.xlane.f32.xlu0 %v1009
        %v1089 = vpop.xlane.xlu0 %1088
        %1090 = vadd.xlane.f32.xlu0 %v1011
        %v1091 = vpop.xlane.xlu0 %1090
        %1092 = vadd.xlane.f32.xlu0 %v1013
        %v1093 = vpop.xlane.xlu0 %1092
        %1094 = vadd.xlane.f32.xlu0 %v1015
        %v1095 = vpop.xlane.xlu0 %1094
        %1096 = vadd.xlane.f32.xlu0 %v1017
        %v1097 = vpop.xlane.xlu0 %1096
        %1098 = vadd.xlane.f32.xlu0 %v1019
        %v1099 = vpop.xlane.xlu0 %1098
        %1100 = vadd.xlane.f32.xlu0 %v1021
        %v1101 = vpop.xlane.xlu0 %1100
        %1102 = vadd.xlane.f32.xlu0 %v1023
        %v1103 = vpop.xlane.xlu0 %1102
        %1104 = vadd.xlane.f32.xlu0 %v1025
        %v1105 = vpop.xlane.xlu0 %1104
        %1106 = vadd.xlane.f32.xlu0 %v1027
        %v1107 = vpop.xlane.xlu0 %1106
        %v1108 = vadd.f32 %v1060, %v1077
        %v1109 = vadd.f32 %v1061, %v1079
        %v1110 = vadd.f32 %v1062, %v1081
        %v1111 = vadd.f32 %v1063, %v1083
        %v1112 = vadd.f32 %v1064, %v1085
        %v1113 = vadd.f32 %v1065, %v1087
        %v1114 = vadd.f32 %v1066, %v1089
        %v1115 = vadd.f32 %v1067, %v1091
        %v1116 = vadd.f32 %v1068, %v1093
        %v1117 = vadd.f32 %v1069, %v1095
        %v1118 = vadd.f32 %v1070, %v1097
        %v1119 = vadd.f32 %v1071, %v1099
        %v1120 = vadd.f32 %v1072, %v1101
        %v1121 = vadd.f32 %v1073, %v1103
        %v1122 = vadd.f32 %v1074, %v1105
        %v1123 = vadd.f32 %v1075, %v1107
        %vm1124 = vcmask 7168
        %1125 = vst.msk [vmem:[#allocation3] sm:$0xff] %vm1124, %v1108
        %1126 = vst.msk [vmem:[#allocation3 + $0x8] sm:$0xff] %vm1124, %v1109
        %1127 = vst.msk [vmem:[#allocation3 + $0x10] sm:$0xff] %vm1124, %v1110
        %1128 = vst.msk [vmem:[#allocation3 + $0x18] sm:$0xff] %vm1124, %v1111
        %1129 = vst.msk [vmem:[#allocation3 + $0x20] sm:$0xff] %vm1124, %v1112
        %1130 = vst.msk [vmem:[#allocation3 + $0x28] sm:$0xff] %vm1124, %v1113
        %1131 = vst.msk [vmem:[#allocation3 + $0x30] sm:$0xff] %vm1124, %v1114
        %1132 = vst.msk [vmem:[#allocation3 + $0x38] sm:$0xff] %vm1124, %v1115
        %1133 = vst.msk [vmem:[#allocation3 + $0x40] sm:$0xff] %vm1124, %v1116
        %1134 = vst.msk [vmem:[#allocation3 + $0x48] sm:$0xff] %vm1124, %v1117
        %1135 = vst.msk [vmem:[#allocation3 + $0x50] sm:$0xff] %vm1124, %v1118
        %1136 = vst.msk [vmem:[#allocation3 + $0x58] sm:$0xff] %vm1124, %v1119
        %1137 = vst.msk [vmem:[#allocation3 + $0x60] sm:$0xff] %vm1124, %v1120
        %1138 = vst.msk [vmem:[#allocation3 + $0x68] sm:$0xff] %vm1124, %v1121
        %1139 = vst.msk [vmem:[#allocation3 + $0x70] sm:$0xff] %vm1124, %v1122
        %1140 = vst.msk [vmem:[#allocation3 + $0x78] sm:$0xff] %vm1124, %v1123
        %v1141 = vld [vmem:[#allocation4] sm:$0xff]
        %v1142 = vld [vmem:[#allocation4 + $0x8] sm:$0xff]
        %v1143 = vld [vmem:[#allocation4 + $0x10] sm:$0xff]
        %v1144 = vld [vmem:[#allocation4 + $0x18] sm:$0xff]
        %v1145 = vld [vmem:[#allocation4 + $0x20] sm:$0xff]
        %v1146 = vld [vmem:[#allocation4 + $0x28] sm:$0xff]
        %v1147 = vld [vmem:[#allocation4 + $0x30] sm:$0xff]
        %v1148 = vld [vmem:[#allocation4 + $0x38] sm:$0xff]
        %v1149 = vld [vmem:[#allocation4 + $0x40] sm:$0xff]
        %v1150 = vld [vmem:[#allocation4 + $0x48] sm:$0xff]
        %v1151 = vld [vmem:[#allocation4 + $0x50] sm:$0xff]
        %v1152 = vld [vmem:[#allocation4 + $0x58] sm:$0xff]
        %v1153 = vld [vmem:[#allocation4 + $0x60] sm:$0xff]
        %v1154 = vld [vmem:[#allocation4 + $0x68] sm:$0xff]
        %v1155 = vld [vmem:[#allocation4 + $0x70] sm:$0xff]
        %v1156 = vld [vmem:[#allocation4 + $0x78] sm:$0xff]
        %v1157 = vmul.f32 %v869, %v1141
        %v1158 = vmul.f32 %v871, %v1142
        %v1159 = vmul.f32 %v873, %v1143
        %v1160 = vmul.f32 %v875, %v1144
        %v1161 = vmul.f32 %v877, %v1145
        %v1162 = vmul.f32 %v879, %v1146
        %v1163 = vmul.f32 %v881, %v1147
        %v1164 = vmul.f32 %v883, %v1148
        %v1165 = vmul.f32 %v885, %v1149
        %v1166 = vmul.f32 %v887, %v1150
        %v1167 = vmul.f32 %v889, %v1151
        %v1168 = vmul.f32 %v891, %v1152
        %v1169 = vmul.f32 %v893, %v1153
        %v1170 = vmul.f32 %v895, %v1154
        %v1171 = vmul.f32 %v897, %v1155
        %v1172 = vmul.f32 %v899, %v1156
        %1173 = vadd.xlane.f32.xlu0 %v1028
        %v1174 = vpop.xlane.xlu0 %1173
        %1175 = vadd.xlane.f32.xlu0 %v1029
        %v1176 = vpop.xlane.xlu0 %1175
        %1177 = vadd.xlane.f32.xlu0 %v1030
        %v1178 = vpop.xlane.xlu0 %1177
        %1179 = vadd.xlane.f32.xlu0 %v1031
        %v1180 = vpop.xlane.xlu0 %1179
        %1181 = vadd.xlane.f32.xlu0 %v1032
        %v1182 = vpop.xlane.xlu0 %1181
        %1183 = vadd.xlane.f32.xlu0 %v1033
        %v1184 = vpop.xlane.xlu0 %1183
        %1185 = vadd.xlane.f32.xlu0 %v1034
        %v1186 = vpop.xlane.xlu0 %1185
        %1187 = vadd.xlane.f32.xlu0 %v1035
        %v1188 = vpop.xlane.xlu0 %1187
        %1189 = vadd.xlane.f32.xlu0 %v1036
        %v1190 = vpop.xlane.xlu0 %1189
        %1191 = vadd.xlane.f32.xlu0 %v1037
        %v1192 = vpop.xlane.xlu0 %1191
        %1193 = vadd.xlane.f32.xlu0 %v1038
        %v1194 = vpop.xlane.xlu0 %1193
        %1195 = vadd.xlane.f32.xlu0 %v1039
        %v1196 = vpop.xlane.xlu0 %1195
        %1197 = vadd.xlane.f32.xlu0 %v1040
        %v1198 = vpop.xlane.xlu0 %1197
        %1199 = vadd.xlane.f32.xlu0 %v1041
        %v1200 = vpop.xlane.xlu0 %1199
        %1201 = vadd.xlane.f32.xlu0 %v1042
        %v1202 = vpop.xlane.xlu0 %1201
        %1203 = vadd.xlane.f32.xlu0 %v1043
        %v1204 = vpop.xlane.xlu0 %1203
        %v1205 = vadd.f32 %v1157, %v1174
        %v1206 = vadd.f32 %v1158, %v1176
        %v1207 = vadd.f32 %v1159, %v1178
        %v1208 = vadd.f32 %v1160, %v1180
        %v1209 = vadd.f32 %v1161, %v1182
        %v1210 = vadd.f32 %v1162, %v1184
        %v1211 = vadd.f32 %v1163, %v1186
        %v1212 = vadd.f32 %v1164, %v1188
        %v1213 = vadd.f32 %v1165, %v1190
        %v1214 = vadd.f32 %v1166, %v1192
        %v1215 = vadd.f32 %v1167, %v1194
        %v1216 = vadd.f32 %v1168, %v1196
        %v1217 = vadd.f32 %v1169, %v1198
        %v1218 = vadd.f32 %v1170, %v1200
        %v1219 = vadd.f32 %v1171, %v1202
        %v1220 = vadd.f32 %v1172, %v1204
        %1221 = vst.msk [vmem:[#allocation4] sm:$0xff] %vm1124, %v1205
        %1222 = vst.msk [vmem:[#allocation4 + $0x8] sm:$0xff] %vm1124, %v1206
        %1223 = vst.msk [vmem:[#allocation4 + $0x10] sm:$0xff] %vm1124, %v1207
        %1224 = vst.msk [vmem:[#allocation4 + $0x18] sm:$0xff] %vm1124, %v1208
        %1225 = vst.msk [vmem:[#allocation4 + $0x20] sm:$0xff] %vm1124, %v1209
        %1226 = vst.msk [vmem:[#allocation4 + $0x28] sm:$0xff] %vm1124, %v1210
        %1227 = vst.msk [vmem:[#allocation4 + $0x30] sm:$0xff] %vm1124, %v1211
        %1228 = vst.msk [vmem:[#allocation4 + $0x38] sm:$0xff] %vm1124, %v1212
        %1229 = vst.msk [vmem:[#allocation4 + $0x40] sm:$0xff] %vm1124, %v1213
        %1230 = vst.msk [vmem:[#allocation4 + $0x48] sm:$0xff] %vm1124, %v1214
        %1231 = vst.msk [vmem:[#allocation4 + $0x50] sm:$0xff] %vm1124, %v1215
        %1232 = vst.msk [vmem:[#allocation4 + $0x58] sm:$0xff] %vm1124, %v1216
        %1233 = vst.msk [vmem:[#allocation4 + $0x60] sm:$0xff] %vm1124, %v1217
        %1234 = vst.msk [vmem:[#allocation4 + $0x68] sm:$0xff] %vm1124, %v1218
        %1235 = vst.msk [vmem:[#allocation4 + $0x70] sm:$0xff] %vm1124, %v1219
        %1236 = vst.msk [vmem:[#allocation4 + $0x78] sm:$0xff] %vm1124, %v1220
        %v1237 = vld [vmem:[#allocation5] sm:$0xff]
        %v1238 = vld [vmem:[#allocation5 + $0x8] sm:$0xff]
        %v1239 = vld [vmem:[#allocation5 + $0x10] sm:$0xff]
        %v1240 = vld [vmem:[#allocation5 + $0x18] sm:$0xff]
        %v1241 = vld [vmem:[#allocation5 + $0x20] sm:$0xff]
        %v1242 = vld [vmem:[#allocation5 + $0x28] sm:$0xff]
        %v1243 = vld [vmem:[#allocation5 + $0x30] sm:$0xff]
        %v1244 = vld [vmem:[#allocation5 + $0x38] sm:$0xff]
        %v1245 = vld [vmem:[#allocation5 + $0x40] sm:$0xff]
        %v1246 = vld [vmem:[#allocation5 + $0x48] sm:$0xff]
        %v1247 = vld [vmem:[#allocation5 + $0x50] sm:$0xff]
        %v1248 = vld [vmem:[#allocation5 + $0x58] sm:$0xff]
        %v1249 = vld [vmem:[#allocation5 + $0x60] sm:$0xff]
        %v1250 = vld [vmem:[#allocation5 + $0x68] sm:$0xff]
        %v1251 = vld [vmem:[#allocation5 + $0x70] sm:$0xff]
        %v1252 = vld [vmem:[#allocation5 + $0x78] sm:$0xff]
        %v1253 = vmul.f32 %v869, %v1237
        %v1254 = vmul.f32 %v871, %v1238
        %v1255 = vmul.f32 %v873, %v1239
        %v1256 = vmul.f32 %v875, %v1240
        %v1257 = vmul.f32 %v877, %v1241
        %v1258 = vmul.f32 %v879, %v1242
        %v1259 = vmul.f32 %v881, %v1243
        %v1260 = vmul.f32 %v883, %v1244
        %v1261 = vmul.f32 %v885, %v1245
        %v1262 = vmul.f32 %v887, %v1246
        %v1263 = vmul.f32 %v889, %v1247
        %v1264 = vmul.f32 %v891, %v1248
        %v1265 = vmul.f32 %v893, %v1249
        %v1266 = vmul.f32 %v895, %v1250
        %v1267 = vmul.f32 %v897, %v1251
        %v1268 = vmul.f32 %v899, %v1252
        %v1269 = vmul.f32 %v1028, %v402
        %v1270 = vmul.f32 %v1029, %v403
        %v1271 = vmul.f32 %v1030, %v404
        %v1272 = vmul.f32 %v1031, %v405
        %v1273 = vmul.f32 %v1032, %v406
        %v1274 = vmul.f32 %v1033, %v407
        %v1275 = vmul.f32 %v1034, %v408
        %v1276 = vmul.f32 %v1035, %v409
        %v1277 = vmul.f32 %v1036, %v410
        %v1278 = vmul.f32 %v1037, %v411
        %v1279 = vmul.f32 %v1038, %v412
        %v1280 = vmul.f32 %v1039, %v413
        %v1281 = vmul.f32 %v1040, %v414
        %v1282 = vmul.f32 %v1041, %v415
        %v1283 = vmul.f32 %v1042, %v416
        %v1284 = vmul.f32 %v1043, %v417
        %1285 = vadd.xlane.f32.xlu0 %v1269
        %v1286 = vpop.xlane.xlu0 %1285
        %1287 = vadd.xlane.f32.xlu0 %v1270
        %v1288 = vpop.xlane.xlu0 %1287
        %1289 = vadd.xlane.f32.xlu0 %v1271
        %v1290 = vpop.xlane.xlu0 %1289
        %1291 = vadd.xlane.f32.xlu0 %v1272
        %v1292 = vpop.xlane.xlu0 %1291
        %1293 = vadd.xlane.f32.xlu0 %v1273
        %v1294 = vpop.xlane.xlu0 %1293
        %1295 = vadd.xlane.f32.xlu0 %v1274
        %v1296 = vpop.xlane.xlu0 %1295
        %1297 = vadd.xlane.f32.xlu0 %v1275
        %v1298 = vpop.xlane.xlu0 %1297
        %1299 = vadd.xlane.f32.xlu0 %v1276
        %v1300 = vpop.xlane.xlu0 %1299
        %1301 = vadd.xlane.f32.xlu0 %v1277
        %v1302 = vpop.xlane.xlu0 %1301
        %1303 = vadd.xlane.f32.xlu0 %v1278
        %v1304 = vpop.xlane.xlu0 %1303
        %1305 = vadd.xlane.f32.xlu0 %v1279
        %v1306 = vpop.xlane.xlu0 %1305
        %1307 = vadd.xlane.f32.xlu0 %v1280
        %v1308 = vpop.xlane.xlu0 %1307
        %1309 = vadd.xlane.f32.xlu0 %v1281
        %v1310 = vpop.xlane.xlu0 %1309
        %1311 = vadd.xlane.f32.xlu0 %v1282
        %v1312 = vpop.xlane.xlu0 %1311
        %1313 = vadd.xlane.f32.xlu0 %v1283
        %v1314 = vpop.xlane.xlu0 %1313
        %1315 = vadd.xlane.f32.xlu0 %v1284
        %v1316 = vpop.xlane.xlu0 %1315
        %v1317 = vadd.f32 %v1253, %v1286
        %v1318 = vadd.f32 %v1254, %v1288
        %v1319 = vadd.f32 %v1255, %v1290
        %v1320 = vadd.f32 %v1256, %v1292
        %v1321 = vadd.f32 %v1257, %v1294
        %v1322 = vadd.f32 %v1258, %v1296
        %v1323 = vadd.f32 %v1259, %v1298
        %v1324 = vadd.f32 %v1260, %v1300
        %v1325 = vadd.f32 %v1261, %v1302
        %v1326 = vadd.f32 %v1262, %v1304
        %v1327 = vadd.f32 %v1263, %v1306
        %v1328 = vadd.f32 %v1264, %v1308
        %v1329 = vadd.f32 %v1265, %v1310
        %v1330 = vadd.f32 %v1266, %v1312
        %v1331 = vadd.f32 %v1267, %v1314
        %v1332 = vadd.f32 %v1268, %v1316
        %1333 = vst.msk [vmem:[#allocation5] sm:$0xff] %vm1124, %v1317
        %1334 = vst.msk [vmem:[#allocation5 + $0x8] sm:$0xff] %vm1124, %v1318
        %1335 = vst.msk [vmem:[#allocation5 + $0x10] sm:$0xff] %vm1124, %v1319
        %1336 = vst.msk [vmem:[#allocation5 + $0x18] sm:$0xff] %vm1124, %v1320
        %1337 = vst.msk [vmem:[#allocation5 + $0x20] sm:$0xff] %vm1124, %v1321
        %1338 = vst.msk [vmem:[#allocation5 + $0x28] sm:$0xff] %vm1124, %v1322
        %1339 = vst.msk [vmem:[#allocation5 + $0x30] sm:$0xff] %vm1124, %v1323
        %1340 = vst.msk [vmem:[#allocation5 + $0x38] sm:$0xff] %vm1124, %v1324
        %1341 = vst.msk [vmem:[#allocation5 + $0x40] sm:$0xff] %vm1124, %v1325
        %1342 = vst.msk [vmem:[#allocation5 + $0x48] sm:$0xff] %vm1124, %v1326
        %1343 = vst.msk [vmem:[#allocation5 + $0x50] sm:$0xff] %vm1124, %v1327
        %1344 = vst.msk [vmem:[#allocation5 + $0x58] sm:$0xff] %vm1124, %v1328
        %1345 = vst.msk [vmem:[#allocation5 + $0x60] sm:$0xff] %vm1124, %v1329
        %1346 = vst.msk [vmem:[#allocation5 + $0x68] sm:$0xff] %vm1124, %v1330
        %1347 = vst.msk [vmem:[#allocation5 + $0x70] sm:$0xff] %vm1124, %v1331
        %1348 = vst.msk [vmem:[#allocation5 + $0x78] sm:$0xff] %vm1124, %v1332
        %1349 = vst.msk [vmem:[#allocation2] sm:$0xff] %vm1124, %v836
        %1350 = vst.msk [vmem:[#allocation2 + $0x8] sm:$0xff] %vm1124, %v837
        %1351 = vst.msk [vmem:[#allocation2 + $0x10] sm:$0xff] %vm1124, %v838
        %1352 = vst.msk [vmem:[#allocation2 + $0x18] sm:$0xff] %vm1124, %v839
        %1353 = vst.msk [vmem:[#allocation2 + $0x20] sm:$0xff] %vm1124, %v840
        %1354 = vst.msk [vmem:[#allocation2 + $0x28] sm:$0xff] %vm1124, %v841
        %1355 = vst.msk [vmem:[#allocation2 + $0x30] sm:$0xff] %vm1124, %v842
        %1356 = vst.msk [vmem:[#allocation2 + $0x38] sm:$0xff] %vm1124, %v843
        %1357 = vst.msk [vmem:[#allocation2 + $0x40] sm:$0xff] %vm1124, %v844
        %1358 = vst.msk [vmem:[#allocation2 + $0x48] sm:$0xff] %vm1124, %v845
        %1359 = vst.msk [vmem:[#allocation2 + $0x50] sm:$0xff] %vm1124, %v846
        %1360 = vst.msk [vmem:[#allocation2 + $0x58] sm:$0xff] %vm1124, %v847
        %1361 = vst.msk [vmem:[#allocation2 + $0x60] sm:$0xff] %vm1124, %v848
        %1362 = vst.msk [vmem:[#allocation2 + $0x68] sm:$0xff] %vm1124, %v849
        %1363 = vst.msk [vmem:[#allocation2 + $0x70] sm:$0xff] %vm1124, %v850
        %1364 = vst.msk [vmem:[#allocation2 + $0x78] sm:$0xff] %vm1124, %v851
        %p1365 = scmp.eq.s32.totalorder %s20, 2
        // Predicated region
        $region79: #{tpu_custom_call.1} parent=69 // pred_check
          %p1366 = pneg %p1365
        $region80: #{tpu_custom_call.1} parent=69 // pred_check_branch
          %1368 = sbr.rel (%p1366) target = $region82
        $region81: #{tpu_custom_call.1} parent=69 // pred_region
          %v1369 = vld [vmem:[#allocation3] sm:$0xff]
          %v1370 = vld [vmem:[#allocation3 + $0x8] sm:$0xff]
          %v1371 = vld [vmem:[#allocation3 + $0x10] sm:$0xff]
          %v1372 = vld [vmem:[#allocation3 + $0x18] sm:$0xff]
          %v1373 = vld [vmem:[#allocation3 + $0x20] sm:$0xff]
          %v1374 = vld [vmem:[#allocation3 + $0x28] sm:$0xff]
          %v1375 = vld [vmem:[#allocation3 + $0x30] sm:$0xff]
          %v1376 = vld [vmem:[#allocation3 + $0x38] sm:$0xff]
          %v1377 = vld [vmem:[#allocation3 + $0x40] sm:$0xff]
          %v1378 = vld [vmem:[#allocation3 + $0x48] sm:$0xff]
          %v1379 = vld [vmem:[#allocation3 + $0x50] sm:$0xff]
          %v1380 = vld [vmem:[#allocation3 + $0x58] sm:$0xff]
          %v1381 = vld [vmem:[#allocation3 + $0x60] sm:$0xff]
          %v1382 = vld [vmem:[#allocation3 + $0x68] sm:$0xff]
          %v1383 = vld [vmem:[#allocation3 + $0x70] sm:$0xff]
          %v1384 = vld [vmem:[#allocation3 + $0x78] sm:$0xff]
          %v1385 = vrcp.pop %v1369
          %v1386 = vmul.f32 %v1369, %v1385
          %v1387 = vsub.f32 1.0, %v1386
          %v1388 = vmul.f32 %v1385, %v1387
          %v1389 = vadd.f32 %v1385, %v1388
          %vm1390 = vweird.f32 %v1369
          %vm1391 = vweird.f32 %v1385
          %vm1392 = vmor %vm1390, %vm1391
          %v1393 = vsel %vm1392, %v1385, %v1389
          %v1394 = vand.u32 2147483647, %v1369
          %vm1395 = vcmp.eq.f32.partialorder %v1394, 8.507059e+37
          %v1396 = vand.u32 %v1369, 2147483648
          %v1397 = vor.u32 1.1754944e-38, %v1396
          %v1398 = vsel %vm1395, %v1397, %v1393
          %v1399 = vmul.f32 1.0, %v1398
          %v1400 = vrcp.pop %v1370
          %v1401 = vmul.f32 %v1370, %v1400
          %v1402 = vsub.f32 1.0, %v1401
          %v1403 = vmul.f32 %v1400, %v1402
          %v1404 = vadd.f32 %v1400, %v1403
          %vm1405 = vweird.f32 %v1370
          %vm1406 = vweird.f32 %v1400
          %vm1407 = vmor %vm1405, %vm1406
          %v1408 = vsel %vm1407, %v1400, %v1404
          %v1409 = vand.u32 2147483647, %v1370
          %vm1410 = vcmp.eq.f32.partialorder %v1409, 8.507059e+37
          %v1411 = vand.u32 %v1370, 2147483648
          %v1412 = vor.u32 1.1754944e-38, %v1411
          %v1413 = vsel %vm1410, %v1412, %v1408
          %v1414 = vmul.f32 1.0, %v1413
          %v1415 = vrcp.pop %v1371
          %v1416 = vmul.f32 %v1371, %v1415
          %v1417 = vsub.f32 1.0, %v1416
          %v1418 = vmul.f32 %v1415, %v1417
          %v1419 = vadd.f32 %v1415, %v1418
          %vm1420 = vweird.f32 %v1371
          %vm1421 = vweird.f32 %v1415
          %vm1422 = vmor %vm1420, %vm1421
          %v1423 = vsel %vm1422, %v1415, %v1419
          %v1424 = vand.u32 2147483647, %v1371
          %vm1425 = vcmp.eq.f32.partialorder %v1424, 8.507059e+37
          %v1426 = vand.u32 %v1371, 2147483648
          %v1427 = vor.u32 1.1754944e-38, %v1426
          %v1428 = vsel %vm1425, %v1427, %v1423
          %v1429 = vmul.f32 1.0, %v1428
          %v1430 = vrcp.pop %v1372
          %v1431 = vmul.f32 %v1372, %v1430
          %v1432 = vsub.f32 1.0, %v1431
          %v1433 = vmul.f32 %v1430, %v1432
          %v1434 = vadd.f32 %v1430, %v1433
          %vm1435 = vweird.f32 %v1372
          %vm1436 = vweird.f32 %v1430
          %vm1437 = vmor %vm1435, %vm1436
          %v1438 = vsel %vm1437, %v1430, %v1434
          %v1439 = vand.u32 2147483647, %v1372
          %vm1440 = vcmp.eq.f32.partialorder %v1439, 8.507059e+37
          %v1441 = vand.u32 %v1372, 2147483648
          %v1442 = vor.u32 1.1754944e-38, %v1441
          %v1443 = vsel %vm1440, %v1442, %v1438
          %v1444 = vmul.f32 1.0, %v1443
          %v1445 = vrcp.pop %v1373
          %v1446 = vmul.f32 %v1373, %v1445
          %v1447 = vsub.f32 1.0, %v1446
          %v1448 = vmul.f32 %v1445, %v1447
          %v1449 = vadd.f32 %v1445, %v1448
          %vm1450 = vweird.f32 %v1373
          %vm1451 = vweird.f32 %v1445
          %vm1452 = vmor %vm1450, %vm1451
          %v1453 = vsel %vm1452, %v1445, %v1449
          %v1454 = vand.u32 2147483647, %v1373
          %vm1455 = vcmp.eq.f32.partialorder %v1454, 8.507059e+37
          %v1456 = vand.u32 %v1373, 2147483648
          %v1457 = vor.u32 1.1754944e-38, %v1456
          %v1458 = vsel %vm1455, %v1457, %v1453
          %v1459 = vmul.f32 1.0, %v1458
          %v1460 = vrcp.pop %v1374
          %v1461 = vmul.f32 %v1374, %v1460
          %v1462 = vsub.f32 1.0, %v1461
          %v1463 = vmul.f32 %v1460, %v1462
          %v1464 = vadd.f32 %v1460, %v1463
          %vm1465 = vweird.f32 %v1374
          %vm1466 = vweird.f32 %v1460
          %vm1467 = vmor %vm1465, %vm1466
          %v1468 = vsel %vm1467, %v1460, %v1464
          %v1469 = vand.u32 2147483647, %v1374
          %vm1470 = vcmp.eq.f32.partialorder %v1469, 8.507059e+37
          %v1471 = vand.u32 %v1374, 2147483648
          %v1472 = vor.u32 1.1754944e-38, %v1471
          %v1473 = vsel %vm1470, %v1472, %v1468
          %v1474 = vmul.f32 1.0, %v1473
          %v1475 = vrcp.pop %v1375
          %v1476 = vmul.f32 %v1375, %v1475
          %v1477 = vsub.f32 1.0, %v1476
          %v1478 = vmul.f32 %v1475, %v1477
          %v1479 = vadd.f32 %v1475, %v1478
          %vm1480 = vweird.f32 %v1375
          %vm1481 = vweird.f32 %v1475
          %vm1482 = vmor %vm1480, %vm1481
          %v1483 = vsel %vm1482, %v1475, %v1479
          %v1484 = vand.u32 2147483647, %v1375
          %vm1485 = vcmp.eq.f32.partialorder %v1484, 8.507059e+37
          %v1486 = vand.u32 %v1375, 2147483648
          %v1487 = vor.u32 1.1754944e-38, %v1486
          %v1488 = vsel %vm1485, %v1487, %v1483
          %v1489 = vmul.f32 1.0, %v1488
          %v1490 = vrcp.pop %v1376
          %v1491 = vmul.f32 %v1376, %v1490
          %v1492 = vsub.f32 1.0, %v1491
          %v1493 = vmul.f32 %v1490, %v1492
          %v1494 = vadd.f32 %v1490, %v1493
          %vm1495 = vweird.f32 %v1376
          %vm1496 = vweird.f32 %v1490
          %vm1497 = vmor %vm1495, %vm1496
          %v1498 = vsel %vm1497, %v1490, %v1494
          %v1499 = vand.u32 2147483647, %v1376
          %vm1500 = vcmp.eq.f32.partialorder %v1499, 8.507059e+37
          %v1501 = vand.u32 %v1376, 2147483648
          %v1502 = vor.u32 1.1754944e-38, %v1501
          %v1503 = vsel %vm1500, %v1502, %v1498
          %v1504 = vmul.f32 1.0, %v1503
          %v1505 = vrcp.pop %v1377
          %v1506 = vmul.f32 %v1377, %v1505
          %v1507 = vsub.f32 1.0, %v1506
          %v1508 = vmul.f32 %v1505, %v1507
          %v1509 = vadd.f32 %v1505, %v1508
          %vm1510 = vweird.f32 %v1377
          %vm1511 = vweird.f32 %v1505
          %vm1512 = vmor %vm1510, %vm1511
          %v1513 = vsel %vm1512, %v1505, %v1509
          %v1514 = vand.u32 2147483647, %v1377
          %vm1515 = vcmp.eq.f32.partialorder %v1514, 8.507059e+37
          %v1516 = vand.u32 %v1377, 2147483648
          %v1517 = vor.u32 1.1754944e-38, %v1516
          %v1518 = vsel %vm1515, %v1517, %v1513
          %v1519 = vmul.f32 1.0, %v1518
          %v1520 = vrcp.pop %v1378
          %v1521 = vmul.f32 %v1378, %v1520
          %v1522 = vsub.f32 1.0, %v1521
          %v1523 = vmul.f32 %v1520, %v1522
          %v1524 = vadd.f32 %v1520, %v1523
          %vm1525 = vweird.f32 %v1378
          %vm1526 = vweird.f32 %v1520
          %vm1527 = vmor %vm1525, %vm1526
          %v1528 = vsel %vm1527, %v1520, %v1524
          %v1529 = vand.u32 2147483647, %v1378
          %vm1530 = vcmp.eq.f32.partialorder %v1529, 8.507059e+37
          %v1531 = vand.u32 %v1378, 2147483648
          %v1532 = vor.u32 1.1754944e-38, %v1531
          %v1533 = vsel %vm1530, %v1532, %v1528
          %v1534 = vmul.f32 1.0, %v1533
          %v1535 = vrcp.pop %v1379
          %v1536 = vmul.f32 %v1379, %v1535
          %v1537 = vsub.f32 1.0, %v1536
          %v1538 = vmul.f32 %v1535, %v1537
          %v1539 = vadd.f32 %v1535, %v1538
          %vm1540 = vweird.f32 %v1379
          %vm1541 = vweird.f32 %v1535
          %vm1542 = vmor %vm1540, %vm1541
          %v1543 = vsel %vm1542, %v1535, %v1539
          %v1544 = vand.u32 2147483647, %v1379
          %vm1545 = vcmp.eq.f32.partialorder %v1544, 8.507059e+37
          %v1546 = vand.u32 %v1379, 2147483648
          %v1547 = vor.u32 1.1754944e-38, %v1546
          %v1548 = vsel %vm1545, %v1547, %v1543
          %v1549 = vmul.f32 1.0, %v1548
          %v1550 = vrcp.pop %v1380
          %v1551 = vmul.f32 %v1380, %v1550
          %v1552 = vsub.f32 1.0, %v1551
          %v1553 = vmul.f32 %v1550, %v1552
          %v1554 = vadd.f32 %v1550, %v1553
          %vm1555 = vweird.f32 %v1380
          %vm1556 = vweird.f32 %v1550
          %vm1557 = vmor %vm1555, %vm1556
          %v1558 = vsel %vm1557, %v1550, %v1554
          %v1559 = vand.u32 2147483647, %v1380
          %vm1560 = vcmp.eq.f32.partialorder %v1559, 8.507059e+37
          %v1561 = vand.u32 %v1380, 2147483648
          %v1562 = vor.u32 1.1754944e-38, %v1561
          %v1563 = vsel %vm1560, %v1562, %v1558
          %v1564 = vmul.f32 1.0, %v1563
          %v1565 = vrcp.pop %v1381
          %v1566 = vmul.f32 %v1381, %v1565
          %v1567 = vsub.f32 1.0, %v1566
          %v1568 = vmul.f32 %v1565, %v1567
          %v1569 = vadd.f32 %v1565, %v1568
          %vm1570 = vweird.f32 %v1381
          %vm1571 = vweird.f32 %v1565
          %vm1572 = vmor %vm1570, %vm1571
          %v1573 = vsel %vm1572, %v1565, %v1569
          %v1574 = vand.u32 2147483647, %v1381
          %vm1575 = vcmp.eq.f32.partialorder %v1574, 8.507059e+37
          %v1576 = vand.u32 %v1381, 2147483648
          %v1577 = vor.u32 1.1754944e-38, %v1576
          %v1578 = vsel %vm1575, %v1577, %v1573
          %v1579 = vmul.f32 1.0, %v1578
          %v1580 = vrcp.pop %v1382
          %v1581 = vmul.f32 %v1382, %v1580
          %v1582 = vsub.f32 1.0, %v1581
          %v1583 = vmul.f32 %v1580, %v1582
          %v1584 = vadd.f32 %v1580, %v1583
          %vm1585 = vweird.f32 %v1382
          %vm1586 = vweird.f32 %v1580
          %vm1587 = vmor %vm1585, %vm1586
          %v1588 = vsel %vm1587, %v1580, %v1584
          %v1589 = vand.u32 2147483647, %v1382
          %vm1590 = vcmp.eq.f32.partialorder %v1589, 8.507059e+37
          %v1591 = vand.u32 %v1382, 2147483648
          %v1592 = vor.u32 1.1754944e-38, %v1591
          %v1593 = vsel %vm1590, %v1592, %v1588
          %v1594 = vmul.f32 1.0, %v1593
          %v1595 = vrcp.pop %v1383
          %v1596 = vmul.f32 %v1383, %v1595
          %v1597 = vsub.f32 1.0, %v1596
          %v1598 = vmul.f32 %v1595, %v1597
          %v1599 = vadd.f32 %v1595, %v1598
          %vm1600 = vweird.f32 %v1383
          %vm1601 = vweird.f32 %v1595
          %vm1602 = vmor %vm1600, %vm1601
          %v1603 = vsel %vm1602, %v1595, %v1599
          %v1604 = vand.u32 2147483647, %v1383
          %vm1605 = vcmp.eq.f32.partialorder %v1604, 8.507059e+37
          %v1606 = vand.u32 %v1383, 2147483648
          %v1607 = vor.u32 1.1754944e-38, %v1606
          %v1608 = vsel %vm1605, %v1607, %v1603
          %v1609 = vmul.f32 1.0, %v1608
          %v1610 = vrcp.pop %v1384
          %v1611 = vmul.f32 %v1384, %v1610
          %v1612 = vsub.f32 1.0, %v1611
          %v1613 = vmul.f32 %v1610, %v1612
          %v1614 = vadd.f32 %v1610, %v1613
          %vm1615 = vweird.f32 %v1384
          %vm1616 = vweird.f32 %v1610
          %vm1617 = vmor %vm1615, %vm1616
          %v1618 = vsel %vm1617, %v1610, %v1614
          %v1619 = vand.u32 2147483647, %v1384
          %vm1620 = vcmp.eq.f32.partialorder %v1619, 8.507059e+37
          %v1621 = vand.u32 %v1384, 2147483648
          %v1622 = vor.u32 1.1754944e-38, %v1621
          %v1623 = vsel %vm1620, %v1622, %v1618
          %v1624 = vmul.f32 1.0, %v1623
          %v1625 = vld [vmem:[#allocation4] sm:$0xff]
          %v1626 = vld [vmem:[#allocation4 + $0x8] sm:$0xff]
          %v1627 = vld [vmem:[#allocation4 + $0x10] sm:$0xff]
          %v1628 = vld [vmem:[#allocation4 + $0x18] sm:$0xff]
          %v1629 = vld [vmem:[#allocation4 + $0x20] sm:$0xff]
          %v1630 = vld [vmem:[#allocation4 + $0x28] sm:$0xff]
          %v1631 = vld [vmem:[#allocation4 + $0x30] sm:$0xff]
          %v1632 = vld [vmem:[#allocation4 + $0x38] sm:$0xff]
          %v1633 = vld [vmem:[#allocation4 + $0x40] sm:$0xff]
          %v1634 = vld [vmem:[#allocation4 + $0x48] sm:$0xff]
          %v1635 = vld [vmem:[#allocation4 + $0x50] sm:$0xff]
          %v1636 = vld [vmem:[#allocation4 + $0x58] sm:$0xff]
          %v1637 = vld [vmem:[#allocation4 + $0x60] sm:$0xff]
          %v1638 = vld [vmem:[#allocation4 + $0x68] sm:$0xff]
          %v1639 = vld [vmem:[#allocation4 + $0x70] sm:$0xff]
          %v1640 = vld [vmem:[#allocation4 + $0x78] sm:$0xff]
          %v1641 = vmul.f32 %v1625, %v1399
          %v1642 = vmul.f32 %v1626, %v1414
          %v1643 = vmul.f32 %v1627, %v1429
          %v1644 = vmul.f32 %v1628, %v1444
          %v1645 = vmul.f32 %v1629, %v1459
          %v1646 = vmul.f32 %v1630, %v1474
          %v1647 = vmul.f32 %v1631, %v1489
          %v1648 = vmul.f32 %v1632, %v1504
          %v1649 = vmul.f32 %v1633, %v1519
          %v1650 = vmul.f32 %v1634, %v1534
          %v1651 = vmul.f32 %v1635, %v1549
          %v1652 = vmul.f32 %v1636, %v1564
          %v1653 = vmul.f32 %v1637, %v1579
          %v1654 = vmul.f32 %v1638, %v1594
          %v1655 = vmul.f32 %v1639, %v1609
          %v1656 = vmul.f32 %v1640, %v1624
          %v1657 = vld [vmem:[#allocation5] sm:$0xff]
          %v1658 = vld [vmem:[#allocation5 + $0x8] sm:$0xff]
          %v1659 = vld [vmem:[#allocation5 + $0x10] sm:$0xff]
          %v1660 = vld [vmem:[#allocation5 + $0x18] sm:$0xff]
          %v1661 = vld [vmem:[#allocation5 + $0x20] sm:$0xff]
          %v1662 = vld [vmem:[#allocation5 + $0x28] sm:$0xff]
          %v1663 = vld [vmem:[#allocation5 + $0x30] sm:$0xff]
          %v1664 = vld [vmem:[#allocation5 + $0x38] sm:$0xff]
          %v1665 = vld [vmem:[#allocation5 + $0x40] sm:$0xff]
          %v1666 = vld [vmem:[#allocation5 + $0x48] sm:$0xff]
          %v1667 = vld [vmem:[#allocation5 + $0x50] sm:$0xff]
          %v1668 = vld [vmem:[#allocation5 + $0x58] sm:$0xff]
          %v1669 = vld [vmem:[#allocation5 + $0x60] sm:$0xff]
          %v1670 = vld [vmem:[#allocation5 + $0x68] sm:$0xff]
          %v1671 = vld [vmem:[#allocation5 + $0x70] sm:$0xff]
          %v1672 = vld [vmem:[#allocation5 + $0x78] sm:$0xff]
          %v1673 = vmul.f32 %v1657, %v1399
          %v1674 = vmul.f32 %v1658, %v1414
          %v1675 = vmul.f32 %v1659, %v1429
          %v1676 = vmul.f32 %v1660, %v1444
          %v1677 = vmul.f32 %v1661, %v1459
          %v1678 = vmul.f32 %v1662, %v1474
          %v1679 = vmul.f32 %v1663, %v1489
          %v1680 = vmul.f32 %v1664, %v1504
          %v1681 = vmul.f32 %v1665, %v1519
          %v1682 = vmul.f32 %v1666, %v1534
          %v1683 = vmul.f32 %v1667, %v1549
          %v1684 = vmul.f32 %v1668, %v1564
          %v1685 = vmul.f32 %v1669, %v1579
          %v1686 = vmul.f32 %v1670, %v1594
          %v1687 = vmul.f32 %v1671, %v1609
          %v1688 = vmul.f32 %v1672, %v1624
          %v1689 = vmul.f32 %v1641, %v1641
          %v1690 = vmul.f32 %v1642, %v1642
          %v1691 = vmul.f32 %v1643, %v1643
          %v1692 = vmul.f32 %v1644, %v1644
          %v1693 = vmul.f32 %v1645, %v1645
          %v1694 = vmul.f32 %v1646, %v1646
          %v1695 = vmul.f32 %v1647, %v1647
          %v1696 = vmul.f32 %v1648, %v1648
          %v1697 = vmul.f32 %v1649, %v1649
          %v1698 = vmul.f32 %v1650, %v1650
          %v1699 = vmul.f32 %v1651, %v1651
          %v1700 = vmul.f32 %v1652, %v1652
          %v1701 = vmul.f32 %v1653, %v1653
          %v1702 = vmul.f32 %v1654, %v1654
          %v1703 = vmul.f32 %v1655, %v1655
          %v1704 = vmul.f32 %v1656, %v1656
          %v1705 = vsub.f32 %v1673, %v1689
          %v1706 = vsub.f32 %v1674, %v1690
          %v1707 = vsub.f32 %v1675, %v1691
          %v1708 = vsub.f32 %v1676, %v1692
          %v1709 = vsub.f32 %v1677, %v1693
          %v1710 = vsub.f32 %v1678, %v1694
          %v1711 = vsub.f32 %v1679, %v1695
          %v1712 = vsub.f32 %v1680, %v1696
          %v1713 = vsub.f32 %v1681, %v1697
          %v1714 = vsub.f32 %v1682, %v1698
          %v1715 = vsub.f32 %v1683, %v1699
          %v1716 = vsub.f32 %v1684, %v1700
          %v1717 = vsub.f32 %v1685, %v1701
          %v1718 = vsub.f32 %v1686, %v1702
          %v1719 = vsub.f32 %v1687, %v1703
          %v1720 = vsub.f32 %v1688, %v1704
          %v1721 = vmax.f32 %v1705, 1e-09
          %v1722 = vmax.f32 %v1706, 1e-09
          %v1723 = vmax.f32 %v1707, 1e-09
          %v1724 = vmax.f32 %v1708, 1e-09
          %v1725 = vmax.f32 %v1709, 1e-09
          %v1726 = vmax.f32 %v1710, 1e-09
          %v1727 = vmax.f32 %v1711, 1e-09
          %v1728 = vmax.f32 %v1712, 1e-09
          %v1729 = vmax.f32 %v1713, 1e-09
          %v1730 = vmax.f32 %v1714, 1e-09
          %v1731 = vmax.f32 %v1715, 1e-09
          %v1732 = vmax.f32 %v1716, 1e-09
          %v1733 = vmax.f32 %v1717, 1e-09
          %v1734 = vmax.f32 %v1718, 1e-09
          %v1735 = vmax.f32 %v1719, 1e-09
          %v1736 = vmax.f32 %v1720, 1e-09
          %v1737 = vrsqrt.pop %v1721
          %v1738 = vmul.f32 %v1737, %v1721
          %v1739 = vmul.f32 %v1738, %v1737
          %v1740 = vmul.f32 0.5, %v1739
          %v1741 = vsub.f32 1.5, %v1740
          %v1742 = vmul.f32 %v1737, %v1741
          %v1743 = vmul.f32 %v1721, %v1742
          %vm1744 = vcmp.eq.f32.partialorder %v1721, inf
          %v1745 = vsel %vm1744, %v1721, %v1743
          %vm1746 = vcmp.eq.f32.partialorder %v1721, 0.0
          %v1747 = vand.u32 %v1721, 2147483648
          %v1748 = vsel %vm1746, %v1747, %v1745
          %v1749 = vrsqrt.pop %v1722
          %v1750 = vmul.f32 %v1749, %v1722
          %v1751 = vmul.f32 %v1750, %v1749
          %v1752 = vmul.f32 0.5, %v1751
          %v1753 = vsub.f32 1.5, %v1752
          %v1754 = vmul.f32 %v1749, %v1753
          %v1755 = vmul.f32 %v1722, %v1754
          %vm1756 = vcmp.eq.f32.partialorder %v1722, inf
          %v1757 = vsel %vm1756, %v1722, %v1755
          %vm1758 = vcmp.eq.f32.partialorder %v1722, 0.0
          %v1759 = vand.u32 %v1722, 2147483648
          %v1760 = vsel %vm1758, %v1759, %v1757
          %v1761 = vrsqrt.pop %v1723
          %v1762 = vmul.f32 %v1761, %v1723
          %v1763 = vmul.f32 %v1762, %v1761
          %v1764 = vmul.f32 0.5, %v1763
          %v1765 = vsub.f32 1.5, %v1764
          %v1766 = vmul.f32 %v1761, %v1765
          %v1767 = vmul.f32 %v1723, %v1766
          %vm1768 = vcmp.eq.f32.partialorder %v1723, inf
          %v1769 = vsel %vm1768, %v1723, %v1767
          %vm1770 = vcmp.eq.f32.partialorder %v1723, 0.0
          %v1771 = vand.u32 %v1723, 2147483648
          %v1772 = vsel %vm1770, %v1771, %v1769
          %v1773 = vrsqrt.pop %v1724
          %v1774 = vmul.f32 %v1773, %v1724
          %v1775 = vmul.f32 %v1774, %v1773
          %v1776 = vmul.f32 0.5, %v1775
          %v1777 = vsub.f32 1.5, %v1776
          %v1778 = vmul.f32 %v1773, %v1777
          %v1779 = vmul.f32 %v1724, %v1778
          %vm1780 = vcmp.eq.f32.partialorder %v1724, inf
          %v1781 = vsel %vm1780, %v1724, %v1779
          %vm1782 = vcmp.eq.f32.partialorder %v1724, 0.0
          %v1783 = vand.u32 %v1724, 2147483648
          %v1784 = vsel %vm1782, %v1783, %v1781
          %v1785 = vrsqrt.pop %v1725
          %v1786 = vmul.f32 %v1785, %v1725
          %v1787 = vmul.f32 %v1786, %v1785
          %v1788 = vmul.f32 0.5, %v1787
          %v1789 = vsub.f32 1.5, %v1788
          %v1790 = vmul.f32 %v1785, %v1789
          %v1791 = vmul.f32 %v1725, %v1790
          %vm1792 = vcmp.eq.f32.partialorder %v1725, inf
          %v1793 = vsel %vm1792, %v1725, %v1791
          %vm1794 = vcmp.eq.f32.partialorder %v1725, 0.0
          %v1795 = vand.u32 %v1725, 2147483648
          %v1796 = vsel %vm1794, %v1795, %v1793
          %v1797 = vrsqrt.pop %v1726
          %v1798 = vmul.f32 %v1797, %v1726
          %v1799 = vmul.f32 %v1798, %v1797
          %v1800 = vmul.f32 0.5, %v1799
          %v1801 = vsub.f32 1.5, %v1800
          %v1802 = vmul.f32 %v1797, %v1801
          %v1803 = vmul.f32 %v1726, %v1802
          %vm1804 = vcmp.eq.f32.partialorder %v1726, inf
          %v1805 = vsel %vm1804, %v1726, %v1803
          %vm1806 = vcmp.eq.f32.partialorder %v1726, 0.0
          %v1807 = vand.u32 %v1726, 2147483648
          %v1808 = vsel %vm1806, %v1807, %v1805
          %v1809 = vrsqrt.pop %v1727
          %v1810 = vmul.f32 %v1809, %v1727
          %v1811 = vmul.f32 %v1810, %v1809
          %v1812 = vmul.f32 0.5, %v1811
          %v1813 = vsub.f32 1.5, %v1812
          %v1814 = vmul.f32 %v1809, %v1813
          %v1815 = vmul.f32 %v1727, %v1814
          %vm1816 = vcmp.eq.f32.partialorder %v1727, inf
          %v1817 = vsel %vm1816, %v1727, %v1815
          %vm1818 = vcmp.eq.f32.partialorder %v1727, 0.0
          %v1819 = vand.u32 %v1727, 2147483648
          %v1820 = vsel %vm1818, %v1819, %v1817
          %v1821 = vrsqrt.pop %v1728
          %v1822 = vmul.f32 %v1821, %v1728
          %v1823 = vmul.f32 %v1822, %v1821
          %v1824 = vmul.f32 0.5, %v1823
          %v1825 = vsub.f32 1.5, %v1824
          %v1826 = vmul.f32 %v1821, %v1825
          %v1827 = vmul.f32 %v1728, %v1826
          %vm1828 = vcmp.eq.f32.partialorder %v1728, inf
          %v1829 = vsel %vm1828, %v1728, %v1827
          %vm1830 = vcmp.eq.f32.partialorder %v1728, 0.0
          %v1831 = vand.u32 %v1728, 2147483648
          %v1832 = vsel %vm1830, %v1831, %v1829
          %v1833 = vrsqrt.pop %v1729
          %v1834 = vmul.f32 %v1833, %v1729
          %v1835 = vmul.f32 %v1834, %v1833
          %v1836 = vmul.f32 0.5, %v1835
          %v1837 = vsub.f32 1.5, %v1836
          %v1838 = vmul.f32 %v1833, %v1837
          %v1839 = vmul.f32 %v1729, %v1838
          %vm1840 = vcmp.eq.f32.partialorder %v1729, inf
          %v1841 = vsel %vm1840, %v1729, %v1839
          %vm1842 = vcmp.eq.f32.partialorder %v1729, 0.0
          %v1843 = vand.u32 %v1729, 2147483648
          %v1844 = vsel %vm1842, %v1843, %v1841
          %v1845 = vrsqrt.pop %v1730
          %v1846 = vmul.f32 %v1845, %v1730
          %v1847 = vmul.f32 %v1846, %v1845
          %v1848 = vmul.f32 0.5, %v1847
          %v1849 = vsub.f32 1.5, %v1848
          %v1850 = vmul.f32 %v1845, %v1849
          %v1851 = vmul.f32 %v1730, %v1850
          %vm1852 = vcmp.eq.f32.partialorder %v1730, inf
          %v1853 = vsel %vm1852, %v1730, %v1851
          %vm1854 = vcmp.eq.f32.partialorder %v1730, 0.0
          %v1855 = vand.u32 %v1730, 2147483648
          %v1856 = vsel %vm1854, %v1855, %v1853
          %v1857 = vrsqrt.pop %v1731
          %v1858 = vmul.f32 %v1857, %v1731
          %v1859 = vmul.f32 %v1858, %v1857
          %v1860 = vmul.f32 0.5, %v1859
          %v1861 = vsub.f32 1.5, %v1860
          %v1862 = vmul.f32 %v1857, %v1861
          %v1863 = vmul.f32 %v1731, %v1862
          %vm1864 = vcmp.eq.f32.partialorder %v1731, inf
          %v1865 = vsel %vm1864, %v1731, %v1863
          %vm1866 = vcmp.eq.f32.partialorder %v1731, 0.0
          %v1867 = vand.u32 %v1731, 2147483648
          %v1868 = vsel %vm1866, %v1867, %v1865
          %v1869 = vrsqrt.pop %v1732
          %v1870 = vmul.f32 %v1869, %v1732
          %v1871 = vmul.f32 %v1870, %v1869
          %v1872 = vmul.f32 0.5, %v1871
          %v1873 = vsub.f32 1.5, %v1872
          %v1874 = vmul.f32 %v1869, %v1873
          %v1875 = vmul.f32 %v1732, %v1874
          %vm1876 = vcmp.eq.f32.partialorder %v1732, inf
          %v1877 = vsel %vm1876, %v1732, %v1875
          %vm1878 = vcmp.eq.f32.partialorder %v1732, 0.0
          %v1879 = vand.u32 %v1732, 2147483648
          %v1880 = vsel %vm1878, %v1879, %v1877
          %v1881 = vrsqrt.pop %v1733
          %v1882 = vmul.f32 %v1881, %v1733
          %v1883 = vmul.f32 %v1882, %v1881
          %v1884 = vmul.f32 0.5, %v1883
          %v1885 = vsub.f32 1.5, %v1884
          %v1886 = vmul.f32 %v1881, %v1885
          %v1887 = vmul.f32 %v1733, %v1886
          %vm1888 = vcmp.eq.f32.partialorder %v1733, inf
          %v1889 = vsel %vm1888, %v1733, %v1887
          %vm1890 = vcmp.eq.f32.partialorder %v1733, 0.0
          %v1891 = vand.u32 %v1733, 2147483648
          %v1892 = vsel %vm1890, %v1891, %v1889
          %v1893 = vrsqrt.pop %v1734
          %v1894 = vmul.f32 %v1893, %v1734
          %v1895 = vmul.f32 %v1894, %v1893
          %v1896 = vmul.f32 0.5, %v1895
          %v1897 = vsub.f32 1.5, %v1896
          %v1898 = vmul.f32 %v1893, %v1897
          %v1899 = vmul.f32 %v1734, %v1898
          %vm1900 = vcmp.eq.f32.partialorder %v1734, inf
          %v1901 = vsel %vm1900, %v1734, %v1899
          %vm1902 = vcmp.eq.f32.partialorder %v1734, 0.0
          %v1903 = vand.u32 %v1734, 2147483648
          %v1904 = vsel %vm1902, %v1903, %v1901
          %v1905 = vrsqrt.pop %v1735
          %v1906 = vmul.f32 %v1905, %v1735
          %v1907 = vmul.f32 %v1906, %v1905
          %v1908 = vmul.f32 0.5, %v1907
          %v1909 = vsub.f32 1.5, %v1908
          %v1910 = vmul.f32 %v1905, %v1909
          %v1911 = vmul.f32 %v1735, %v1910
          %vm1912 = vcmp.eq.f32.partialorder %v1735, inf
          %v1913 = vsel %vm1912, %v1735, %v1911
          %vm1914 = vcmp.eq.f32.partialorder %v1735, 0.0
          %v1915 = vand.u32 %v1735, 2147483648
          %v1916 = vsel %vm1914, %v1915, %v1913
          %v1917 = vrsqrt.pop %v1736
          %v1918 = vmul.f32 %v1917, %v1736
          %v1919 = vmul.f32 %v1918, %v1917
          %v1920 = vmul.f32 0.5, %v1919
          %v1921 = vsub.f32 1.5, %v1920
          %v1922 = vmul.f32 %v1917, %v1921
          %v1923 = vmul.f32 %v1736, %v1922
          %vm1924 = vcmp.eq.f32.partialorder %v1736, inf
          %v1925 = vsel %vm1924, %v1736, %v1923
          %vm1926 = vcmp.eq.f32.partialorder %v1736, 0.0
          %v1927 = vand.u32 %v1736, 2147483648
          %v1928 = vsel %vm1926, %v1927, %v1925
          %1929 = vst.msk [vmem:[%s308] sm:$0xff] %vm1124, %v1641
          %1930 = vst.msk [vmem:[%s308 + $0x8] sm:$0xff] %vm1124, %v1642
          %1931 = vst.msk [vmem:[%s308 + $0x10] sm:$0xff] %vm1124, %v1643
          %1932 = vst.msk [vmem:[%s308 + $0x18] sm:$0xff] %vm1124, %v1644
          %1933 = vst.msk [vmem:[%s308 + $0x20] sm:$0xff] %vm1124, %v1645
          %1934 = vst.msk [vmem:[%s308 + $0x28] sm:$0xff] %vm1124, %v1646
          %1935 = vst.msk [vmem:[%s308 + $0x30] sm:$0xff] %vm1124, %v1647
          %1936 = vst.msk [vmem:[%s308 + $0x38] sm:$0xff] %vm1124, %v1648
          %1937 = vst.msk [vmem:[%s308 + $0x40] sm:$0xff] %vm1124, %v1649
          %1938 = vst.msk [vmem:[%s308 + $0x48] sm:$0xff] %vm1124, %v1650
          %1939 = vst.msk [vmem:[%s308 + $0x50] sm:$0xff] %vm1124, %v1651
          %1940 = vst.msk [vmem:[%s308 + $0x58] sm:$0xff] %vm1124, %v1652
          %1941 = vst.msk [vmem:[%s308 + $0x60] sm:$0xff] %vm1124, %v1653
          %1942 = vst.msk [vmem:[%s308 + $0x68] sm:$0xff] %vm1124, %v1654
          %1943 = vst.msk [vmem:[%s308 + $0x70] sm:$0xff] %vm1124, %v1655
          %1944 = vst.msk [vmem:[%s308 + $0x78] sm:$0xff] %vm1124, %v1656
          %1945 = vst.msk [vmem:[%s308 + $0x80] sm:$0xff] %vm1124, %v1748
          %1946 = vst.msk [vmem:[%s308 + $0x88] sm:$0xff] %vm1124, %v1760
          %1947 = vst.msk [vmem:[%s308 + $0x90] sm:$0xff] %vm1124, %v1772
          %1948 = vst.msk [vmem:[%s308 + $0x98] sm:$0xff] %vm1124, %v1784
          %1949 = vst.msk [vmem:[%s308 + $0xa0] sm:$0xff] %vm1124, %v1796
          %1950 = vst.msk [vmem:[%s308 + $0xa8] sm:$0xff] %vm1124, %v1808
          %1951 = vst.msk [vmem:[%s308 + $0xb0] sm:$0xff] %vm1124, %v1820
          %1952 = vst.msk [vmem:[%s308 + $0xb8] sm:$0xff] %vm1124, %v1832
          %1953 = vst.msk [vmem:[%s308 + $0xc0] sm:$0xff] %vm1124, %v1844
          %1954 = vst.msk [vmem:[%s308 + $0xc8] sm:$0xff] %vm1124, %v1856
          %1955 = vst.msk [vmem:[%s308 + $0xd0] sm:$0xff] %vm1124, %v1868
          %1956 = vst.msk [vmem:[%s308 + $0xd8] sm:$0xff] %vm1124, %v1880
          %1957 = vst.msk [vmem:[%s308 + $0xe0] sm:$0xff] %vm1124, %v1892
          %1958 = vst.msk [vmem:[%s308 + $0xe8] sm:$0xff] %vm1124, %v1904
          %1959 = vst.msk [vmem:[%s308 + $0xf0] sm:$0xff] %vm1124, %v1916
          %1960 = vst.msk [vmem:[%s308 + $0xf8] sm:$0xff] %vm1124, %v1928
        $region82: #{tpu_custom_call.1} parent=69 // pred_fallthru
          _
        %p1961 = scmp.lt.s32.totalorder %s19, 1
        %s1962 = scalar_select %p1961, %s19, 1
        %s1963 = smul.addr %s1962, 32
        %s1964 = smul.addr %s1963, 8
        %s1965 = scalar_lea.vmem %s4, %s1964
        // Predicated region
        $region83: #{tpu_custom_call.1} parent=69 // pred_check
          %p1966 = pneg %p136
        $region84: #{tpu_custom_call.1} parent=69 // pred_check_branch
          %1968 = sbr.rel (%p1966) target = $region86
        $region85: #{tpu_custom_call.1} parent=69 // pred_region
          _
        $region86: #{tpu_custom_call.1} parent=69 // pred_fallthru
          _
      $region70: #{tpu_custom_call.1} parent=5 // pred_fallthru
        _
      %p1969 = scmp.le.s32.totalorder 2, %s10
      // Predicated region
      $region87: #{tpu_custom_call.1} parent=5 // pred_check
        %p1970 = pneg %p1969
      $region88: #{tpu_custom_call.1} parent=5 // pred_check_branch
        %1972 = sbr.rel (%p1970) target = $region90
      $region89: #{tpu_custom_call.1} parent=5 // pred_region
        %s1973 = ssub.s32 %s10, 2
        // Predicated region
        $region91: #{tpu_custom_call.1} parent=89 // pred_check
          %p1974 = pneg %p142
        $region92: #{tpu_custom_call.1} parent=89 // pred_check_branch
          %1976 = sbr.rel (%p1974) target = $region94
        $region93: #{tpu_custom_call.1} parent=89 // pred_region
          %p1977 = scmp.lt.s32.totalorder %s21, 1
          %s1978 = scalar_select %p1977, %s21, 1
          %s1979 = smul.addr %s1978, 32
          %s1980 = smul.addr %s1979, 8
          %s1981 = scalar_lea.vmem %s4, %s1980
        $region94: #{tpu_custom_call.1} parent=89 // pred_fallthru
          _
      $region90: #{tpu_custom_call.1} parent=5 // pred_fallthru
        _
    $region6: #{tpu_custom_call.1} parent=1 // loop_footer
      %s14 = sadd.s32 1, %s10
    $region7: #{tpu_custom_call.1} parent=1 // loop_footer_branch
      %9 = sbr.rel target = $region3
    $region8: #{tpu_custom_call.1} parent=1 // loop_exit
      _

</llo_original>
